<compile_context>
chip_gen: v5e
topology: v5e:2x2
jax: 0.10.0
libtpu: 0.0.40
codegen_flags: <defaults>
</compile_context>

<pallas_src>
import jax
import jax.numpy as jnp
from jax.experimental import pallas as pl
from jax.experimental.pallas import tpu as pltpu


def _student_kernel(sents_ref, lens_ref, table_ref, w1_ref, b1_ref,
                    w2_ref, b2_ref, out_ref):
    """Fused embedding lookup (one-hot @ table) + masked mean-pool + MLP."""
    TB, T = sents_ref.shape
    V, D = table_ref.shape

    ids = jnp.clip(sents_ref[...], 0, V - 1)          # (TB, T) int32, bounds-safe
    lens = lens_ref[...]                               # (TB, 1) int32

    # ---- masked token histogram (one-hot counts), fully vectorized --------
    # counts[b, v] = number of valid (t < len[b]) tokens equal to v.
    v_iota = jax.lax.broadcasted_iota(jnp.int32, (TB, V), 1)
    counts = jnp.zeros((TB, V), jnp.float32)
    for t in range(T):                                 # static unroll: T vector ops on (TB, V)
        tok_t = ids[:, t:t + 1]                        # (TB, 1)
        valid_t = lens > t                             # (TB, 1) pad mask
        counts = counts + jnp.where((v_iota == tok_t) & valid_t, 1.0, 0.0)

    # ---- pooled sum on the MXU: counts @ table, f32 accumulation ----------
    if T <= 256:
        # counts are small integers -> exact in bf16; bf16 x bf16 MXU path.
        pooled_sum = jnp.dot(counts.astype(jnp.bfloat16), table_ref[...],
                             preferred_element_type=jnp.float32)
    else:
        pooled_sum = jnp.dot(counts, table_ref[...].astype(jnp.float32),
                             preferred_element_type=jnp.float32)

    inv_len = 1.0 / jnp.maximum(lens, 1).astype(jnp.float32)   # no div-by-zero
    pooled = pooled_sum * inv_len                               # (TB, D) f32

    # ---- classifier: Linear -> ReLU -> Linear (MXU, f32 accumulation) -----
    h = jnp.dot(pooled, w1_ref[...],
                preferred_element_type=jnp.float32) + b1_ref[...]
    h = jnp.maximum(h, 0.0)
    out_ref[...] = jnp.dot(h, w2_ref[...],
                           preferred_element_type=jnp.float32) + b2_ref[...]


def student_forward(sents, lens, params, *, batch_tile=128):
    """sents: int32 (B, T) padded token ids; lens: int32 (B,) valid lengths.

    batch_tile: 128 fills the MXU M dim on v5e; use 256 on v6e/v7x.
    """
    table = params["emb"]                       # (V, D) bf16
    w1, b1, w2, b2 = params["w1"], params["b1"], params["w2"], params["b2"]
    B, T = sents.shape
    V, D = table.shape
    H = w1.shape[1]
    C = w2.shape[1]

    # lane-dense output: pad the class dim to a multiple of 128
    C_pad = ((C + 127) // 128) * 128
    w2_p = jnp.pad(w2, ((0, 0), (0, C_pad - C)))
    b2_p = jnp.pad(b2, ((0, 0), (0, C_pad - C)))

    # pad batch to a multiple of the tile (padded rows sliced off below)
    TB = batch_tile
    B_pad = ((B + TB - 1) // TB) * TB
    if B_pad != B:
        sents = jnp.pad(sents, ((0, B_pad - B), (0, 0)))
        lens = jnp.pad(lens, (0, B_pad - B))
    sents_i = sents.astype(jnp.int32)                      # (B_pad, T)
    lens_i = lens.astype(jnp.int32).reshape(B_pad, 1)      # (B_pad, 1)

    # VMEM budget from block sizes (double-buffered), clamped so it is never
    # more restrictive than the per-chip defaults at these sizes.
    tab_bytes = V * D * jnp.dtype(table.dtype).itemsize
    block_bytes = (
        2 * (TB * T * 4) + 2 * (TB * 4)                    # sents, lens tiles
        + 2 * tab_bytes                                    # resident table
        + 2 * (D * H + H + H * C_pad + C_pad) * 4          # classifier weights
        + 2 * (TB * C_pad * 4)                             # output tile
    )
    vmem_limit = int(min(32 * 1024 * 1024,
                         max(16 * 1024 * 1024, 8 * block_bytes)))

    grid_spec = pltpu.PrefetchScalarGridSpec(
        num_scalar_prefetch=0,
        grid=(B_pad // TB,),
        in_specs=[
            pl.BlockSpec((TB, T), lambda i: (i, 0)),        # token ids (VMEM)
            pl.BlockSpec((TB, 1), lambda i: (i, 0)),        # lens (VMEM)
            pl.BlockSpec((V, D), lambda i: (0, 0)),         # embedding table
            pl.BlockSpec((D, H), lambda i: (0, 0)),         # w1
            pl.BlockSpec((1, H), lambda i: (0, 0)),         # b1
            pl.BlockSpec((H, C_pad), lambda i: (0, 0)),     # w2 (padded)
            pl.BlockSpec((1, C_pad), lambda i: (0, 0)),     # b2 (padded)
        ],
        out_specs=pl.BlockSpec((TB, C_pad), lambda i: (i, 0)),
    )

    out = pl.pallas_call(
        _student_kernel,
        out_shape=jax.ShapeDtypeStruct((B_pad, C_pad), jnp.float32),
        grid_spec=grid_spec,
        compiler_params=pltpu.CompilerParams(
            dimension_semantics=("parallel",),
            vmem_limit_bytes=vmem_limit,
        ),
    )(sents_i, lens_i, table, w1, b1, w2_p, b2_p)
    return out[:B, :C]


def student_forward_ref(sents, lens, params):
    """Pure-JAX reference with identical semantics (correctness check)."""
    table = params["emb"].astype(jnp.float32)
    w1, b1, w2, b2 = params["w1"], params["b1"], params["w2"], params["b2"]
    B, T = sents.shape
    V = table.shape[0]
    ids = jnp.clip(sents, 0, V - 1)
    emb = jnp.take(table, ids, axis=0)                                # (B,T,D)
    mask = (jnp.arange(T)[None, :] < lens[:, None]).astype(jnp.float32)
    denom = jnp.maximum(lens, 1).astype(jnp.float32)[:, None]
    pooled = jnp.sum(emb * mask[:, :, None], axis=1) / denom          # (B, D)
    h = jnp.maximum(pooled @ w1 + b1, 0.0)
    return h @ w2 + b2


def make_params(key, vocab=64, emb_dim=32, hidden=32, num_classes=3,
                embedding_init_range=0.1, classifier_init_range=0.1):
    """Deterministic synthetic parameters (mirrors init_weights semantics:
    uniform weights, zero biases).  Embedding stored in bf16; classifier
    params stay f32 (tiny)."""
    k_emb, k_w1, k_w2 = jax.random.split(key, 3)
    emb = jax.random.uniform(k_emb, (vocab, emb_dim), jnp.float32,
                             -embedding_init_range, embedding_init_range)
    return {
        "emb": emb.astype(jnp.bfloat16),
        "w1": jax.random.uniform(k_w1, (emb_dim, hidden), jnp.float32,
                                 -classifier_init_range, classifier_init_range),
        "b1": jnp.zeros((1, hidden), jnp.float32),
        "w2": jax.random.uniform(k_w2, (hidden, num_classes), jnp.float32,
                                 -classifier_init_range, classifier_init_range),
        "b2": jnp.zeros((1, num_classes), jnp.float32),
    }


if __name__ == "__main__":
    key = jax.random.PRNGKey(0)
    k_params, k_sents, k_lens = jax.random.split(key, 3)

    B, T = 16, 8
    VOCAB, D, H, C = 64, 32, 32, 3

    params = make_params(k_params, vocab=VOCAB, emb_dim=D, hidden=H,
                         num_classes=C)
    sents = jax.random.randint(k_sents, (B, T), 1, VOCAB, dtype=jnp.int32)
    lens = jax.random.randint(k_lens, (B,), 1, T + 1, dtype=jnp.int32)

    logits = student_forward(sents, lens, params)   # batch_tile=128 default
    jax.block_until_ready(logits)

    assert logits.shape == (B, C) and logits.dtype == jnp.float32

    ref = student_forward_ref(sents, lens, params)
    assert jnp.allclose(logits, ref, atol=5e-3, rtol=5e-3), (
        "kernel/reference mismatch:\n"
        f"max abs err = {jnp.max(jnp.abs(logits - ref))}")

    print("KERNEL_OK")
</pallas_src>

<mosaic_0001>
module attributes {stable_mosaic.version = 11 : i64} {
  func.func @_student_kernel(%arg0: i32, %arg1: memref<128x8xi32, #tpu.memory_space<vmem>>, %arg2: memref<128x1xi32, #tpu.memory_space<vmem>>, %arg3: memref<64x32xbf16, #tpu.memory_space<vmem>>, %arg4: memref<32x32xf32, #tpu.memory_space<vmem>>, %arg5: memref<1x32xf32, #tpu.memory_space<vmem>>, %arg6: memref<32x128xf32, #tpu.memory_space<vmem>>, %arg7: memref<1x128xf32, #tpu.memory_space<vmem>>, %arg8: memref<128x128xf32, #tpu.memory_space<vmem>>) attributes {dimension_semantics = [#tpu.dimension_semantics<parallel>], iteration_bounds = array<i64: 1>, scalar_prefetch = 0 : i64, scratch_operands = 0 : i64, tpu.core_type = #tpu.core_type<tc>, window_params = [{transform_indices = @transform_0, window_bounds = array<i64: 128, 8>}, {transform_indices = @transform_1, window_bounds = array<i64: 128, 1>}, {pipeline_mode = #tpu.pipeline_mode<synchronous>, transform_indices = @transform_2, window_bounds = array<i64: 64, 32>}, {pipeline_mode = #tpu.pipeline_mode<synchronous>, transform_indices = @transform_3, window_bounds = array<i64: 32, 32>}, {pipeline_mode = #tpu.pipeline_mode<synchronous>, transform_indices = @transform_4, window_bounds = array<i64: 1, 32>}, {pipeline_mode = #tpu.pipeline_mode<synchronous>, transform_indices = @transform_5, window_bounds = array<i64: 32, 128>}, {pipeline_mode = #tpu.pipeline_mode<synchronous>, transform_indices = @transform_6, window_bounds = array<i64: 1, 128>}, {transform_indices = @transform_7, window_bounds = array<i64: 128, 128>}]} {
    %c0 = arith.constant 0 : index
    %c0_0 = arith.constant 0 : index
    %0 = vector.load %arg1[%c0, %c0_0] : memref<128x8xi32, #tpu.memory_space<vmem>>, vector<128x8xi32>
    %c0_i32 = arith.constant 0 : i32
    %c63_i32 = arith.constant 63 : i32
    %1 = vector.broadcast %c0_i32 : i32 to vector<128x8xi32>
    %2 = arith.maxsi %1, %0 : vector<128x8xi32>
    %3 = vector.broadcast %c63_i32 : i32 to vector<128x8xi32>
    %4 = arith.minsi %3, %2 : vector<128x8xi32>
    %c0_1 = arith.constant 0 : index
    %c0_2 = arith.constant 0 : index
    %5 = vector.load %arg2[%c0_1, %c0_2] : memref<128x1xi32, #tpu.memory_space<vmem>>, vector<128x1xi32>
    %6 = tpu.iota {dimensions = array<i32: 1>} : vector<128x64xi32>
    %cst = arith.constant 0.000000e+00 : f32
    %7 = vector.broadcast %cst : f32 to vector<128x64xf32>
    %8 = vector.extract_strided_slice %4 {offsets = [0, 0], sizes = [128, 1], strides = [1, 1]} : vector<128x8xi32> to vector<128x1xi32>
    %c0_i32_3 = arith.constant 0 : i32
    %9 = vector.broadcast %c0_i32_3 : i32 to vector<128x1xi32>
    %10 = arith.cmpi sgt, %5, %9 : vector<128x1xi32>
    %11 = vector.broadcast %8 : vector<128x1xi32> to vector<128x64xi32>
    %12 = arith.cmpi eq, %6, %11 : vector<128x64xi32>
    %13 = vector.broadcast %10 : vector<128x1xi1> to vector<128x64xi1>
    %14 = arith.andi %12, %13 : vector<128x64xi1>
    %cst_4 = arith.constant 1.000000e+00 : f32
    %cst_5 = arith.constant 0.000000e+00 : f32
    %15 = vector.broadcast %cst_4 : f32 to vector<128x64xf32>
    %16 = vector.broadcast %cst_5 : f32 to vector<128x64xf32>
    %17 = arith.select %14, %15, %16 : vector<128x64xi1>, vector<128x64xf32>
    %18 = arith.addf %7, %17 : vector<128x64xf32>
    %19 = vector.extract_strided_slice %4 {offsets = [0, 1], sizes = [128, 1], strides = [1, 1]} : vector<128x8xi32> to vector<128x1xi32>
    %c1_i32 = arith.constant 1 : i32
    %20 = vector.broadcast %c1_i32 : i32 to vector<128x1xi32>
    %21 = arith.cmpi sgt, %5, %20 : vector<128x1xi32>
    %22 = vector.broadcast %19 : vector<128x1xi32> to vector<128x64xi32>
    %23 = arith.cmpi eq, %6, %22 : vector<128x64xi32>
    %24 = vector.broadcast %21 : vector<128x1xi1> to vector<128x64xi1>
    %25 = arith.andi %23, %24 : vector<128x64xi1>
    %cst_6 = arith.constant 1.000000e+00 : f32
    %cst_7 = arith.constant 0.000000e+00 : f32
    %26 = vector.broadcast %cst_6 : f32 to vector<128x64xf32>
    %27 = vector.broadcast %cst_7 : f32 to vector<128x64xf32>
    %28 = arith.select %25, %26, %27 : vector<128x64xi1>, vector<128x64xf32>
    %29 = arith.addf %18, %28 : vector<128x64xf32>
    %30 = vector.extract_strided_slice %4 {offsets = [0, 2], sizes = [128, 1], strides = [1, 1]} : vector<128x8xi32> to vector<128x1xi32>
    %c2_i32 = arith.constant 2 : i32
    %31 = vector.broadcast %c2_i32 : i32 to vector<128x1xi32>
    %32 = arith.cmpi sgt, %5, %31 : vector<128x1xi32>
    %33 = vector.broadcast %30 : vector<128x1xi32> to vector<128x64xi32>
    %34 = arith.cmpi eq, %6, %33 : vector<128x64xi32>
    %35 = vector.broadcast %32 : vector<128x1xi1> to vector<128x64xi1>
    %36 = arith.andi %34, %35 : vector<128x64xi1>
    %cst_8 = arith.constant 1.000000e+00 : f32
    %cst_9 = arith.constant 0.000000e+00 : f32
    %37 = vector.broadcast %cst_8 : f32 to vector<128x64xf32>
    %38 = vector.broadcast %cst_9 : f32 to vector<128x64xf32>
    %39 = arith.select %36, %37, %38 : vector<128x64xi1>, vector<128x64xf32>
    %40 = arith.addf %29, %39 : vector<128x64xf32>
    %41 = vector.extract_strided_slice %4 {offsets = [0, 3], sizes = [128, 1], strides = [1, 1]} : vector<128x8xi32> to vector<128x1xi32>
    %c3_i32 = arith.constant 3 : i32
    %42 = vector.broadcast %c3_i32 : i32 to vector<128x1xi32>
    %43 = arith.cmpi sgt, %5, %42 : vector<128x1xi32>
    %44 = vector.broadcast %41 : vector<128x1xi32> to vector<128x64xi32>
    %45 = arith.cmpi eq, %6, %44 : vector<128x64xi32>
    %46 = vector.broadcast %43 : vector<128x1xi1> to vector<128x64xi1>
    %47 = arith.andi %45, %46 : vector<128x64xi1>
    %cst_10 = arith.constant 1.000000e+00 : f32
    %cst_11 = arith.constant 0.000000e+00 : f32
    %48 = vector.broadcast %cst_10 : f32 to vector<128x64xf32>
    %49 = vector.broadcast %cst_11 : f32 to vector<128x64xf32>
    %50 = arith.select %47, %48, %49 : vector<128x64xi1>, vector<128x64xf32>
    %51 = arith.addf %40, %50 : vector<128x64xf32>
    %52 = vector.extract_strided_slice %4 {offsets = [0, 4], sizes = [128, 1], strides = [1, 1]} : vector<128x8xi32> to vector<128x1xi32>
    %c4_i32 = arith.constant 4 : i32
    %53 = vector.broadcast %c4_i32 : i32 to vector<128x1xi32>
    %54 = arith.cmpi sgt, %5, %53 : vector<128x1xi32>
    %55 = vector.broadcast %52 : vector<128x1xi32> to vector<128x64xi32>
    %56 = arith.cmpi eq, %6, %55 : vector<128x64xi32>
    %57 = vector.broadcast %54 : vector<128x1xi1> to vector<128x64xi1>
    %58 = arith.andi %56, %57 : vector<128x64xi1>
    %cst_12 = arith.constant 1.000000e+00 : f32
    %cst_13 = arith.constant 0.000000e+00 : f32
    %59 = vector.broadcast %cst_12 : f32 to vector<128x64xf32>
    %60 = vector.broadcast %cst_13 : f32 to vector<128x64xf32>
    %61 = arith.select %58, %59, %60 : vector<128x64xi1>, vector<128x64xf32>
    %62 = arith.addf %51, %61 : vector<128x64xf32>
    %63 = vector.extract_strided_slice %4 {offsets = [0, 5], sizes = [128, 1], strides = [1, 1]} : vector<128x8xi32> to vector<128x1xi32>
    %c5_i32 = arith.constant 5 : i32
    %64 = vector.broadcast %c5_i32 : i32 to vector<128x1xi32>
    %65 = arith.cmpi sgt, %5, %64 : vector<128x1xi32>
    %66 = vector.broadcast %63 : vector<128x1xi32> to vector<128x64xi32>
    %67 = arith.cmpi eq, %6, %66 : vector<128x64xi32>
    %68 = vector.broadcast %65 : vector<128x1xi1> to vector<128x64xi1>
    %69 = arith.andi %67, %68 : vector<128x64xi1>
    %cst_14 = arith.constant 1.000000e+00 : f32
    %cst_15 = arith.constant 0.000000e+00 : f32
    %70 = vector.broadcast %cst_14 : f32 to vector<128x64xf32>
    %71 = vector.broadcast %cst_15 : f32 to vector<128x64xf32>
    %72 = arith.select %69, %70, %71 : vector<128x64xi1>, vector<128x64xf32>
    %73 = arith.addf %62, %72 : vector<128x64xf32>
    %74 = vector.extract_strided_slice %4 {offsets = [0, 6], sizes = [128, 1], strides = [1, 1]} : vector<128x8xi32> to vector<128x1xi32>
    %c6_i32 = arith.constant 6 : i32
    %75 = vector.broadcast %c6_i32 : i32 to vector<128x1xi32>
    %76 = arith.cmpi sgt, %5, %75 : vector<128x1xi32>
    %77 = vector.broadcast %74 : vector<128x1xi32> to vector<128x64xi32>
    %78 = arith.cmpi eq, %6, %77 : vector<128x64xi32>
    %79 = vector.broadcast %76 : vector<128x1xi1> to vector<128x64xi1>
    %80 = arith.andi %78, %79 : vector<128x64xi1>
    %cst_16 = arith.constant 1.000000e+00 : f32
    %cst_17 = arith.constant 0.000000e+00 : f32
    %81 = vector.broadcast %cst_16 : f32 to vector<128x64xf32>
    %82 = vector.broadcast %cst_17 : f32 to vector<128x64xf32>
    %83 = arith.select %80, %81, %82 : vector<128x64xi1>, vector<128x64xf32>
    %84 = arith.addf %73, %83 : vector<128x64xf32>
    %85 = vector.extract_strided_slice %4 {offsets = [0, 7], sizes = [128, 1], strides = [1, 1]} : vector<128x8xi32> to vector<128x1xi32>
    %c7_i32 = arith.constant 7 : i32
    %86 = vector.broadcast %c7_i32 : i32 to vector<128x1xi32>
    %87 = arith.cmpi sgt, %5, %86 : vector<128x1xi32>
    %88 = vector.broadcast %85 : vector<128x1xi32> to vector<128x64xi32>
    %89 = arith.cmpi eq, %6, %88 : vector<128x64xi32>
    %90 = vector.broadcast %87 : vector<128x1xi1> to vector<128x64xi1>
    %91 = arith.andi %89, %90 : vector<128x64xi1>
    %cst_18 = arith.constant 1.000000e+00 : f32
    %cst_19 = arith.constant 0.000000e+00 : f32
    %92 = vector.broadcast %cst_18 : f32 to vector<128x64xf32>
    %93 = vector.broadcast %cst_19 : f32 to vector<128x64xf32>
    %94 = arith.select %91, %92, %93 : vector<128x64xi1>, vector<128x64xf32>
    %95 = arith.addf %84, %94 : vector<128x64xf32>
    %96 = arith.truncf %95 : vector<128x64xf32> to vector<128x64xbf16>
    %c0_20 = arith.constant 0 : index
    %c0_21 = arith.constant 0 : index
    %97 = vector.load %arg3[%c0_20, %c0_21] : memref<64x32xbf16, #tpu.memory_space<vmem>>, vector<64x32xbf16>
    %cst_22 = arith.constant dense<0.000000e+00> : vector<128x32xf32>
    %98 = tpu.matmul %96, %97, %cst_22 {dimension_numbers = #tpu.dot_dimension_numbers<[1], [0], [0], [1], [0, 0, 1, 1], [], []>} : vector<128x64xbf16>, vector<64x32xbf16>, vector<128x32xf32> -> vector<128x32xf32>
    %c1_i32_23 = arith.constant 1 : i32
    %99 = vector.broadcast %c1_i32_23 : i32 to vector<128x1xi32>
    %100 = arith.maxsi %5, %99 : vector<128x1xi32>
    %101 = arith.sitofp %100 : vector<128x1xi32> to vector<128x1xf32>
    %cst_24 = arith.constant 1.000000e+00 : f32
    %102 = vector.broadcast %cst_24 : f32 to vector<128x1xf32>
    %103 = arith.divf %102, %101 : vector<128x1xf32>
    %104 = vector.broadcast %103 : vector<128x1xf32> to vector<128x32xf32>
    %105 = arith.mulf %98, %104 : vector<128x32xf32>
    %c0_25 = arith.constant 0 : index
    %c0_26 = arith.constant 0 : index
    %106 = vector.load %arg4[%c0_25, %c0_26] : memref<32x32xf32, #tpu.memory_space<vmem>>, vector<32x32xf32>
    %cst_27 = arith.constant dense<0.000000e+00> : vector<128x32xf32>
    %107 = tpu.matmul %105, %106, %cst_27 {dimension_numbers = #tpu.dot_dimension_numbers<[1], [0], [0], [1], [0, 0, 1, 1], [], []>} : vector<128x32xf32>, vector<32x32xf32>, vector<128x32xf32> -> vector<128x32xf32>
    %c0_28 = arith.constant 0 : index
    %c0_29 = arith.constant 0 : index
    %108 = vector.load %arg5[%c0_28, %c0_29] : memref<1x32xf32, #tpu.memory_space<vmem>>, vector<1x32xf32>
    %109 = vector.broadcast %108 : vector<1x32xf32> to vector<128x32xf32>
    %110 = arith.addf %107, %109 : vector<128x32xf32>
    %cst_30 = arith.constant 0.000000e+00 : f32
    %111 = vector.broadcast %cst_30 : f32 to vector<128x32xf32>
    %112 = arith.maximumf %110, %111 : vector<128x32xf32>
    %c0_31 = arith.constant 0 : index
    %c0_32 = arith.constant 0 : index
    %113 = vector.load %arg6[%c0_31, %c0_32] : memref<32x128xf32, #tpu.memory_space<vmem>>, vector<32x128xf32>
    %cst_33 = arith.constant dense<0.000000e+00> : vector<128x128xf32>
    %114 = tpu.matmul %112, %113, %cst_33 {dimension_numbers = #tpu.dot_dimension_numbers<[1], [0], [0], [1], [0, 0, 1, 1], [], []>} : vector<128x32xf32>, vector<32x128xf32>, vector<128x128xf32> -> vector<128x128xf32>
    %c0_34 = arith.constant 0 : index
    %c0_35 = arith.constant 0 : index
    %115 = vector.load %arg7[%c0_34, %c0_35] : memref<1x128xf32, #tpu.memory_space<vmem>>, vector<1x128xf32>
    %116 = vector.broadcast %115 : vector<1x128xf32> to vector<128x128xf32>
    %117 = arith.addf %114, %116 : vector<128x128xf32>
    %c0_36 = arith.constant 0 : index
    %c0_37 = arith.constant 0 : index
    %118 = vector.load %arg8[%c0_36, %c0_37] : memref<128x128xf32, #tpu.memory_space<vmem>>, vector<128x128xf32>
    tpu.vector_store %arg8[%c0_36, %c0_37], %117 {strides = array<i32>} : memref<128x128xf32, #tpu.memory_space<vmem>>, vector<128x128xf32>,
    return
  }
  func.func @transform_0(%arg0: i32) -> (i32, i32) {
    %c0_i32 = arith.constant 0 : i32
    %c0_i32_0 = arith.constant 0 : i32
    return %arg0, %c0_i32 : i32, i32
  }
  func.func @transform_1(%arg0: i32) -> (i32, i32) {
    %c0_i32 = arith.constant 0 : i32
    %c0_i32_0 = arith.constant 0 : i32
    return %arg0, %c0_i32 : i32, i32
  }
  func.func @transform_2(%arg0: i32) -> (i32, i32) {
    %c0_i32 = arith.constant 0 : i32
    %c0_i32_0 = arith.constant 0 : i32
    %c0_i32_1 = arith.constant 0 : i32
    return %c0_i32, %c0_i32_0 : i32, i32
  }
  func.func @transform_3(%arg0: i32) -> (i32, i32) {
    %c0_i32 = arith.constant 0 : i32
    %c0_i32_0 = arith.constant 0 : i32
    %c0_i32_1 = arith.constant 0 : i32
    return %c0_i32, %c0_i32_0 : i32, i32
  }
  func.func @transform_4(%arg0: i32) -> (i32, i32) {
    %c0_i32 = arith.constant 0 : i32
    %c0_i32_0 = arith.constant 0 : i32
    %c0_i32_1 = arith.constant 0 : i32
    return %c0_i32, %c0_i32_0 : i32, i32
  }
  func.func @transform_5(%arg0: i32) -> (i32, i32) {
    %c0_i32 = arith.constant 0 : i32
    %c0_i32_0 = arith.constant 0 : i32
    %c0_i32_1 = arith.constant 0 : i32
    return %c0_i32, %c0_i32_0 : i32, i32
  }
  func.func @transform_6(%arg0: i32) -> (i32, i32) {
    %c0_i32 = arith.constant 0 : i32
    %c0_i32_0 = arith.constant 0 : i32
    %c0_i32_1 = arith.constant 0 : i32
    return %c0_i32, %c0_i32_0 : i32, i32
  }
  func.func @transform_7(%arg0: i32) -> (i32, i32) {
    %c0_i32 = arith.constant 0 : i32
    %c0_i32_0 = arith.constant 0 : i32
    return %arg0, %c0_i32 : i32, i32
  }
}

</mosaic_0001>

<llo_original>
// kernel: tpu_custom_call.1
$region0: #{tpu_custom_call.1}
  #allocation0 [shape = 'u32[]', space=smem, size = 0x4, offset = 0x4, fixed_abs, tag = 'smem constant byte address 0x4 - core index']
  #allocation1 [shape = 'u32[72,128]{1,0:T(1,128)}', space=vmem, size = 0x9000, scoped, tag = 'internal scratch']
  %s0 = inlined_call_operand.vmem [shape: s32[128,8], index: 0, kind: input, shape index: {}]
  %s1 = inlined_call_operand.vmem [shape: s32[128,1], index: 1, kind: input, shape index: {}]
  %s2 = inlined_call_operand.vmem [shape: bf16[64,32], index: 2, kind: input, shape index: {}]
  %s3 = inlined_call_operand.vmem [shape: f32[32,32], index: 3, kind: input, shape index: {}]
  %s4 = inlined_call_operand.vmem [shape: f32[1,32], index: 4, kind: input, shape index: {}]
  %s5 = inlined_call_operand.vmem [shape: f32[32,128], index: 5, kind: input, shape index: {}]
  %s6 = inlined_call_operand.vmem [shape: f32[1,128], index: 6, kind: input, shape index: {}]
  %s7 = inlined_call_operand.hbm [shape: f32[128,128], index: 7, kind: output, shape index: {}]
  %s8 = sld [smem:[#allocation0]]
  $region38: #{tpu_custom_call.1} parent=0
    _
  %s10 = ssub.s32 1, %s8
  %s11 = scalar_select 0, %s10, %s8
  $region1: #{tpu_custom_call.1} parent=0
    #allocation2 [shape = 'u8[65536]{0}', space=vmem, size = 0x10000, scoped, tag = 'output window, operand 0, single buffered']
    #allocation3 [shape = 's32[1]{0}', space=sflag, size = 0x4, scoped, tag = 'scoped memory for tpu_custom_call.1']
    %12 = vsyncpa [#allocation3], 0
    // Predicated region
    $region2: #{tpu_custom_call.1} parent=1 // pred_check
      _
    $region3: #{tpu_custom_call.1} parent=1 // pred_check_branch
      %14 = sbr.rel (0) target = $region5
    $region4: #{tpu_custom_call.1} parent=1 // pred_region
      _
    $region5: #{tpu_custom_call.1} parent=1 // pred_fallthru
      _
    // Predicated region
    $region6: #{tpu_custom_call.1} parent=1 // pred_check
      _
    $region7: #{tpu_custom_call.1} parent=1 // pred_check_branch
      %16 = sbr.rel (0) target = $region9
    $region8: #{tpu_custom_call.1} parent=1 // pred_region
      _
    $region9: #{tpu_custom_call.1} parent=1 // pred_fallthru
      _
    // Predicated region
    $region10: #{tpu_custom_call.1} parent=1 // pred_check
      _
    $region11: #{tpu_custom_call.1} parent=1 // pred_check_branch
      %18 = sbr.rel (0) target = $region13
    $region12: #{tpu_custom_call.1} parent=1 // pred_region
      _
    $region13: #{tpu_custom_call.1} parent=1 // pred_fallthru
      _
    // Predicated region
    $region14: #{tpu_custom_call.1} parent=1 // pred_check
      _
    $region15: #{tpu_custom_call.1} parent=1 // pred_check_branch
      %20 = sbr.rel (0) target = $region17
    $region16: #{tpu_custom_call.1} parent=1 // pred_region
      _
    $region17: #{tpu_custom_call.1} parent=1 // pred_fallthru
      _
    // Predicated region
    $region18: #{tpu_custom_call.1} parent=1 // pred_check
      _
    $region19: #{tpu_custom_call.1} parent=1 // pred_check_branch
      %22 = sbr.rel (0) target = $region21
    $region20: #{tpu_custom_call.1} parent=1 // pred_region
      _
    $region21: #{tpu_custom_call.1} parent=1 // pred_fallthru
      _
    // Predicated region
    $region22: #{tpu_custom_call.1} parent=1 // pred_check
      _
    $region23: #{tpu_custom_call.1} parent=1 // pred_check_branch
      %24 = sbr.rel (0) target = $region25
    $region24: #{tpu_custom_call.1} parent=1 // pred_region
      _
    $region25: #{tpu_custom_call.1} parent=1 // pred_fallthru
      _
    // Predicated region
    $region26: #{tpu_custom_call.1} parent=1 // pred_check
      _
    $region27: #{tpu_custom_call.1} parent=1 // pred_check_branch
      %26 = sbr.rel (0) target = $region29
    $region28: #{tpu_custom_call.1} parent=1 // pred_region
      _
    $region29: #{tpu_custom_call.1} parent=1 // pred_fallthru
      _
    %v28 = vld [vmem:[%s0] sm:$0xff]
    %v29 = vld [vmem:[%s0 + $0x8] sm:$0xff]
    %v30 = vld [vmem:[%s0 + $0x10] sm:$0xff]
    %v31 = vld [vmem:[%s0 + $0x18] sm:$0xff]
    %v32 = vld [vmem:[%s0 + $0x20] sm:$0xff]
    %v33 = vld [vmem:[%s0 + $0x28] sm:$0xff]
    %v34 = vld [vmem:[%s0 + $0x30] sm:$0xff]
    %v35 = vld [vmem:[%s0 + $0x38] sm:$0xff]
    %v36 = vld [vmem:[%s0 + $0x40] sm:$0xff]
    %v37 = vld [vmem:[%s0 + $0x48] sm:$0xff]
    %v38 = vld [vmem:[%s0 + $0x50] sm:$0xff]
    %v39 = vld [vmem:[%s0 + $0x58] sm:$0xff]
    %v40 = vld [vmem:[%s0 + $0x60] sm:$0xff]
    %v41 = vld [vmem:[%s0 + $0x68] sm:$0xff]
    %v42 = vld [vmem:[%s0 + $0x70] sm:$0xff]
    %v43 = vld [vmem:[%s0 + $0x78] sm:$0xff]
    %vm44 = vcmp.gt.s32.totalorder %v28, 0
    %v45 = vsel %vm44, %v28, 0
    %vm46 = vcmp.gt.s32.totalorder %v29, 0
    %v47 = vsel %vm46, %v29, 0
    %vm48 = vcmp.gt.s32.totalorder %v30, 0
    %v49 = vsel %vm48, %v30, 0
    %vm50 = vcmp.gt.s32.totalorder %v31, 0
    %v51 = vsel %vm50, %v31, 0
    %vm52 = vcmp.gt.s32.totalorder %v32, 0
    %v53 = vsel %vm52, %v32, 0
    %vm54 = vcmp.gt.s32.totalorder %v33, 0
    %v55 = vsel %vm54, %v33, 0
    %vm56 = vcmp.gt.s32.totalorder %v34, 0
    %v57 = vsel %vm56, %v34, 0
    %vm58 = vcmp.gt.s32.totalorder %v35, 0
    %v59 = vsel %vm58, %v35, 0
    %vm60 = vcmp.gt.s32.totalorder %v36, 0
    %v61 = vsel %vm60, %v36, 0
    %vm62 = vcmp.gt.s32.totalorder %v37, 0
    %v63 = vsel %vm62, %v37, 0
    %vm64 = vcmp.gt.s32.totalorder %v38, 0
    %v65 = vsel %vm64, %v38, 0
    %vm66 = vcmp.gt.s32.totalorder %v39, 0
    %v67 = vsel %vm66, %v39, 0
    %vm68 = vcmp.gt.s32.totalorder %v40, 0
    %v69 = vsel %vm68, %v40, 0
    %vm70 = vcmp.gt.s32.totalorder %v41, 0
    %v71 = vsel %vm70, %v41, 0
    %vm72 = vcmp.gt.s32.totalorder %v42, 0
    %v73 = vsel %vm72, %v42, 0
    %vm74 = vcmp.gt.s32.totalorder %v43, 0
    %v75 = vsel %vm74, %v43, 0
    %vm76 = vcmp.lt.s32.totalorder %v45, 63
    %v77 = vsel %vm76, %v45, 63
    %vm78 = vcmp.lt.s32.totalorder %v47, 63
    %v79 = vsel %vm78, %v47, 63
    %vm80 = vcmp.lt.s32.totalorder %v49, 63
    %v81 = vsel %vm80, %v49, 63
    %vm82 = vcmp.lt.s32.totalorder %v51, 63
    %v83 = vsel %vm82, %v51, 63
    %vm84 = vcmp.lt.s32.totalorder %v53, 63
    %v85 = vsel %vm84, %v53, 63
    %vm86 = vcmp.lt.s32.totalorder %v55, 63
    %v87 = vsel %vm86, %v55, 63
    %vm88 = vcmp.lt.s32.totalorder %v57, 63
    %v89 = vsel %vm88, %v57, 63
    %vm90 = vcmp.lt.s32.totalorder %v59, 63
    %v91 = vsel %vm90, %v59, 63
    %vm92 = vcmp.lt.s32.totalorder %v61, 63
    %v93 = vsel %vm92, %v61, 63
    %vm94 = vcmp.lt.s32.totalorder %v63, 63
    %v95 = vsel %vm94, %v63, 63
    %vm96 = vcmp.lt.s32.totalorder %v65, 63
    %v97 = vsel %vm96, %v65, 63
    %vm98 = vcmp.lt.s32.totalorder %v67, 63
    %v99 = vsel %vm98, %v67, 63
    %vm100 = vcmp.lt.s32.totalorder %v69, 63
    %v101 = vsel %vm100, %v69, 63
    %vm102 = vcmp.lt.s32.totalorder %v71, 63
    %v103 = vsel %vm102, %v71, 63
    %vm104 = vcmp.lt.s32.totalorder %v73, 63
    %v105 = vsel %vm104, %v73, 63
    %vm106 = vcmp.lt.s32.totalorder %v75, 63
    %v107 = vsel %vm106, %v75, 63
    %v108 = vld [vmem:[%s1] sm:$0xff]
    %v109 = vld [vmem:[%s1 + $0x8] sm:$0xff]
    %v110 = vld [vmem:[%s1 + $0x10] sm:$0xff]
    %v111 = vld [vmem:[%s1 + $0x18] sm:$0xff]
    %v112 = vld [vmem:[%s1 + $0x20] sm:$0xff]
    %v113 = vld [vmem:[%s1 + $0x28] sm:$0xff]
    %v114 = vld [vmem:[%s1 + $0x30] sm:$0xff]
    %v115 = vld [vmem:[%s1 + $0x38] sm:$0xff]
    %v116 = vld [vmem:[%s1 + $0x40] sm:$0xff]
    %v117 = vld [vmem:[%s1 + $0x48] sm:$0xff]
    %v118 = vld [vmem:[%s1 + $0x50] sm:$0xff]
    %v119 = vld [vmem:[%s1 + $0x58] sm:$0xff]
    %v120 = vld [vmem:[%s1 + $0x60] sm:$0xff]
    %v121 = vld [vmem:[%s1 + $0x68] sm:$0xff]
    %v122 = vld [vmem:[%s1 + $0x70] sm:$0xff]
    %v123 = vld [vmem:[%s1 + $0x78] sm:$0xff]
    %v124 = vlaneseq
    %v125 = vand.u32 %v124, 127
    %vm126 = vcmp.gt.s32.totalorder %v108, 0
    %vm127 = vcmp.gt.s32.totalorder %v109, 0
    %vm128 = vcmp.gt.s32.totalorder %v110, 0
    %vm129 = vcmp.gt.s32.totalorder %v111, 0
    %vm130 = vcmp.gt.s32.totalorder %v112, 0
    %vm131 = vcmp.gt.s32.totalorder %v113, 0
    %vm132 = vcmp.gt.s32.totalorder %v114, 0
    %vm133 = vcmp.gt.s32.totalorder %v115, 0
    %vm134 = vcmp.gt.s32.totalorder %v116, 0
    %vm135 = vcmp.gt.s32.totalorder %v117, 0
    %vm136 = vcmp.gt.s32.totalorder %v118, 0
    %vm137 = vcmp.gt.s32.totalorder %v119, 0
    %vm138 = vcmp.gt.s32.totalorder %v120, 0
    %vm139 = vcmp.gt.s32.totalorder %v121, 0
    %vm140 = vcmp.gt.s32.totalorder %v122, 0
    %vm141 = vcmp.gt.s32.totalorder %v123, 0
    %142 = vset.pattern.permute.xlu0 0
    %143 = vperm.xlu0 %142, %v77
    %v144 = vpop.permute.xlu0 %143
    %145 = vset.pattern.permute.xlu0 0
    %146 = vperm.xlu0 %145, %v79
    %v147 = vpop.permute.xlu0 %146
    %148 = vset.pattern.permute.xlu0 0
    %149 = vperm.xlu0 %148, %v81
    %v150 = vpop.permute.xlu0 %149
    %151 = vset.pattern.permute.xlu0 0
    %152 = vperm.xlu0 %151, %v83
    %v153 = vpop.permute.xlu0 %152
    %154 = vset.pattern.permute.xlu0 0
    %155 = vperm.xlu0 %154, %v85
    %v156 = vpop.permute.xlu0 %155
    %157 = vset.pattern.permute.xlu0 0
    %158 = vperm.xlu0 %157, %v87
    %v159 = vpop.permute.xlu0 %158
    %160 = vset.pattern.permute.xlu0 0
    %161 = vperm.xlu0 %160, %v89
    %v162 = vpop.permute.xlu0 %161
    %163 = vset.pattern.permute.xlu0 0
    %164 = vperm.xlu0 %163, %v91
    %v165 = vpop.permute.xlu0 %164
    %166 = vset.pattern.permute.xlu0 0
    %167 = vperm.xlu0 %166, %v93
    %v168 = vpop.permute.xlu0 %167
    %169 = vset.pattern.permute.xlu0 0
    %170 = vperm.xlu0 %169, %v95
    %v171 = vpop.permute.xlu0 %170
    %172 = vset.pattern.permute.xlu0 0
    %173 = vperm.xlu0 %172, %v97
    %v174 = vpop.permute.xlu0 %173
    %175 = vset.pattern.permute.xlu0 0
    %176 = vperm.xlu0 %175, %v99
    %v177 = vpop.permute.xlu0 %176
    %178 = vset.pattern.permute.xlu0 0
    %179 = vperm.xlu0 %178, %v101
    %v180 = vpop.permute.xlu0 %179
    %181 = vset.pattern.permute.xlu0 0
    %182 = vperm.xlu0 %181, %v103
    %v183 = vpop.permute.xlu0 %182
    %184 = vset.pattern.permute.xlu0 0
    %185 = vperm.xlu0 %184, %v105
    %v186 = vpop.permute.xlu0 %185
    %187 = vset.pattern.permute.xlu0 0
    %188 = vperm.xlu0 %187, %v107
    %v189 = vpop.permute.xlu0 %188
    %vm190 = vcmp.eq.s32.totalorder %v125, %v144
    %vm191 = vcmp.eq.s32.totalorder %v125, %v147
    %vm192 = vcmp.eq.s32.totalorder %v125, %v150
    %vm193 = vcmp.eq.s32.totalorder %v125, %v153
    %vm194 = vcmp.eq.s32.totalorder %v125, %v156
    %vm195 = vcmp.eq.s32.totalorder %v125, %v159
    %vm196 = vcmp.eq.s32.totalorder %v125, %v162
    %vm197 = vcmp.eq.s32.totalorder %v125, %v165
    %vm198 = vcmp.eq.s32.totalorder %v125, %v168
    %vm199 = vcmp.eq.s32.totalorder %v125, %v171
    %vm200 = vcmp.eq.s32.totalorder %v125, %v174
    %vm201 = vcmp.eq.s32.totalorder %v125, %v177
    %vm202 = vcmp.eq.s32.totalorder %v125, %v180
    %vm203 = vcmp.eq.s32.totalorder %v125, %v183
    %vm204 = vcmp.eq.s32.totalorder %v125, %v186
    %vm205 = vcmp.eq.s32.totalorder %v125, %v189
    %v206 = vsel %vm126, 1, 0
    %v207 = vsel %vm127, 1, 0
    %v208 = vsel %vm128, 1, 0
    %v209 = vsel %vm129, 1, 0
    %v210 = vsel %vm130, 1, 0
    %v211 = vsel %vm131, 1, 0
    %v212 = vsel %vm132, 1, 0
    %v213 = vsel %vm133, 1, 0
    %v214 = vsel %vm134, 1, 0
    %v215 = vsel %vm135, 1, 0
    %v216 = vsel %vm136, 1, 0
    %v217 = vsel %vm137, 1, 0
    %v218 = vsel %vm138, 1, 0
    %v219 = vsel %vm139, 1, 0
    %v220 = vsel %vm140, 1, 0
    %v221 = vsel %vm141, 1, 0
    %222 = vset.pattern.permute.xlu0 0
    %223 = vperm.xlu0 %222, %v206
    %v224 = vpop.permute.xlu0 %223
    %225 = vset.pattern.permute.xlu0 0
    %226 = vperm.xlu0 %225, %v207
    %v227 = vpop.permute.xlu0 %226
    %228 = vset.pattern.permute.xlu0 0
    %229 = vperm.xlu0 %228, %v208
    %v230 = vpop.permute.xlu0 %229
    %231 = vset.pattern.permute.xlu0 0
    %232 = vperm.xlu0 %231, %v209
    %v233 = vpop.permute.xlu0 %232
    %234 = vset.pattern.permute.xlu0 0
    %235 = vperm.xlu0 %234, %v210
    %v236 = vpop.permute.xlu0 %235
    %237 = vset.pattern.permute.xlu0 0
    %238 = vperm.xlu0 %237, %v211
    %v239 = vpop.permute.xlu0 %238
    %240 = vset.pattern.permute.xlu0 0
    %241 = vperm.xlu0 %240, %v212
    %v242 = vpop.permute.xlu0 %241
    %243 = vset.pattern.permute.xlu0 0
    %244 = vperm.xlu0 %243, %v213
    %v245 = vpop.permute.xlu0 %244
    %246 = vset.pattern.permute.xlu0 0
    %247 = vperm.xlu0 %246, %v214
    %v248 = vpop.permute.xlu0 %247
    %249 = vset.pattern.permute.xlu0 0
    %250 = vperm.xlu0 %249, %v215
    %v251 = vpop.permute.xlu0 %250
    %252 = vset.pattern.permute.xlu0 0
    %253 = vperm.xlu0 %252, %v216
    %v254 = vpop.permute.xlu0 %253
    %255 = vset.pattern.permute.xlu0 0
    %256 = vperm.xlu0 %255, %v217
    %v257 = vpop.permute.xlu0 %256
    %258 = vset.pattern.permute.xlu0 0
    %259 = vperm.xlu0 %258, %v218
    %v260 = vpop.permute.xlu0 %259
    %261 = vset.pattern.permute.xlu0 0
    %262 = vperm.xlu0 %261, %v219
    %v263 = vpop.permute.xlu0 %262
    %264 = vset.pattern.permute.xlu0 0
    %265 = vperm.xlu0 %264, %v220
    %v266 = vpop.permute.xlu0 %265
    %267 = vset.pattern.permute.xlu0 0
    %268 = vperm.xlu0 %267, %v221
    %v269 = vpop.permute.xlu0 %268
    %vm270 = vcmp.eq.s32.totalorder %v224, 1
    %vm271 = vcmp.eq.s32.totalorder %v227, 1
    %vm272 = vcmp.eq.s32.totalorder %v230, 1
    %vm273 = vcmp.eq.s32.totalorder %v233, 1
    %vm274 = vcmp.eq.s32.totalorder %v236, 1
    %vm275 = vcmp.eq.s32.totalorder %v239, 1
    %vm276 = vcmp.eq.s32.totalorder %v242, 1
    %vm277 = vcmp.eq.s32.totalorder %v245, 1
    %vm278 = vcmp.eq.s32.totalorder %v248, 1
    %vm279 = vcmp.eq.s32.totalorder %v251, 1
    %vm280 = vcmp.eq.s32.totalorder %v254, 1
    %vm281 = vcmp.eq.s32.totalorder %v257, 1
    %vm282 = vcmp.eq.s32.totalorder %v260, 1
    %vm283 = vcmp.eq.s32.totalorder %v263, 1
    %vm284 = vcmp.eq.s32.totalorder %v266, 1
    %vm285 = vcmp.eq.s32.totalorder %v269, 1
    %vm286 = vmand %vm190, %vm270
    %vm287 = vmand %vm191, %vm271
    %vm288 = vmand %vm192, %vm272
    %vm289 = vmand %vm193, %vm273
    %vm290 = vmand %vm194, %vm274
    %vm291 = vmand %vm195, %vm275
    %vm292 = vmand %vm196, %vm276
    %vm293 = vmand %vm197, %vm277
    %vm294 = vmand %vm198, %vm278
    %vm295 = vmand %vm199, %vm279
    %vm296 = vmand %vm200, %vm280
    %vm297 = vmand %vm201, %vm281
    %vm298 = vmand %vm202, %vm282
    %vm299 = vmand %vm203, %vm283
    %vm300 = vmand %vm204, %vm284
    %vm301 = vmand %vm205, %vm285
    %v302 = vsel %vm286, 1.0, 0.0
    %v303 = vsel %vm287, 1.0, 0.0
    %v304 = vsel %vm288, 1.0, 0.0
    %v305 = vsel %vm289, 1.0, 0.0
    %v306 = vsel %vm290, 1.0, 0.0
    %v307 = vsel %vm291, 1.0, 0.0
    %v308 = vsel %vm292, 1.0, 0.0
    %v309 = vsel %vm293, 1.0, 0.0
    %v310 = vsel %vm294, 1.0, 0.0
    %v311 = vsel %vm295, 1.0, 0.0
    %v312 = vsel %vm296, 1.0, 0.0
    %v313 = vsel %vm297, 1.0, 0.0
    %v314 = vsel %vm298, 1.0, 0.0
    %v315 = vsel %vm299, 1.0, 0.0
    %v316 = vsel %vm300, 1.0, 0.0
    %v317 = vsel %vm301, 1.0, 0.0
    %v318 = vadd.f32 %v302, 0.0
    %v319 = vadd.f32 %v303, 0.0
    %v320 = vadd.f32 %v304, 0.0
    %v321 = vadd.f32 %v305, 0.0
    %v322 = vadd.f32 %v306, 0.0
    %v323 = vadd.f32 %v307, 0.0
    %v324 = vadd.f32 %v308, 0.0
    %v325 = vadd.f32 %v309, 0.0
    %v326 = vadd.f32 %v310, 0.0
    %v327 = vadd.f32 %v311, 0.0
    %v328 = vadd.f32 %v312, 0.0
    %v329 = vadd.f32 %v313, 0.0
    %v330 = vadd.f32 %v314, 0.0
    %v331 = vadd.f32 %v315, 0.0
    %v332 = vadd.f32 %v316, 0.0
    %v333 = vadd.f32 %v317, 0.0
    %vm334 = vcmp.gt.s32.totalorder %v108, 1
    %vm335 = vcmp.gt.s32.totalorder %v109, 1
    %vm336 = vcmp.gt.s32.totalorder %v110, 1
    %vm337 = vcmp.gt.s32.totalorder %v111, 1
    %vm338 = vcmp.gt.s32.totalorder %v112, 1
    %vm339 = vcmp.gt.s32.totalorder %v113, 1
    %vm340 = vcmp.gt.s32.totalorder %v114, 1
    %vm341 = vcmp.gt.s32.totalorder %v115, 1
    %vm342 = vcmp.gt.s32.totalorder %v116, 1
    %vm343 = vcmp.gt.s32.totalorder %v117, 1
    %vm344 = vcmp.gt.s32.totalorder %v118, 1
    %vm345 = vcmp.gt.s32.totalorder %v119, 1
    %vm346 = vcmp.gt.s32.totalorder %v120, 1
    %vm347 = vcmp.gt.s32.totalorder %v121, 1
    %vm348 = vcmp.gt.s32.totalorder %v122, 1
    %vm349 = vcmp.gt.s32.totalorder %v123, 1
    %350 = vset.pattern.permute.xlu0 1
    %351 = vperm.xlu0 %350, %v77
    %v352 = vpop.permute.xlu0 %351
    %353 = vset.pattern.permute.xlu0 1
    %354 = vperm.xlu0 %353, %v79
    %v355 = vpop.permute.xlu0 %354
    %356 = vset.pattern.permute.xlu0 1
    %357 = vperm.xlu0 %356, %v81
    %v358 = vpop.permute.xlu0 %357
    %359 = vset.pattern.permute.xlu0 1
    %360 = vperm.xlu0 %359, %v83
    %v361 = vpop.permute.xlu0 %360
    %362 = vset.pattern.permute.xlu0 1
    %363 = vperm.xlu0 %362, %v85
    %v364 = vpop.permute.xlu0 %363
    %365 = vset.pattern.permute.xlu0 1
    %366 = vperm.xlu0 %365, %v87
    %v367 = vpop.permute.xlu0 %366
    %368 = vset.pattern.permute.xlu0 1
    %369 = vperm.xlu0 %368, %v89
    %v370 = vpop.permute.xlu0 %369
    %371 = vset.pattern.permute.xlu0 1
    %372 = vperm.xlu0 %371, %v91
    %v373 = vpop.permute.xlu0 %372
    %374 = vset.pattern.permute.xlu0 1
    %375 = vperm.xlu0 %374, %v93
    %v376 = vpop.permute.xlu0 %375
    %377 = vset.pattern.permute.xlu0 1
    %378 = vperm.xlu0 %377, %v95
    %v379 = vpop.permute.xlu0 %378
    %380 = vset.pattern.permute.xlu0 1
    %381 = vperm.xlu0 %380, %v97
    %v382 = vpop.permute.xlu0 %381
    %383 = vset.pattern.permute.xlu0 1
    %384 = vperm.xlu0 %383, %v99
    %v385 = vpop.permute.xlu0 %384
    %386 = vset.pattern.permute.xlu0 1
    %387 = vperm.xlu0 %386, %v101
    %v388 = vpop.permute.xlu0 %387
    %389 = vset.pattern.permute.xlu0 1
    %390 = vperm.xlu0 %389, %v103
    %v391 = vpop.permute.xlu0 %390
    %392 = vset.pattern.permute.xlu0 1
    %393 = vperm.xlu0 %392, %v105
    %v394 = vpop.permute.xlu0 %393
    %395 = vset.pattern.permute.xlu0 1
    %396 = vperm.xlu0 %395, %v107
    %v397 = vpop.permute.xlu0 %396
    %vm398 = vcmp.eq.s32.totalorder %v125, %v352
    %vm399 = vcmp.eq.s32.totalorder %v125, %v355
    %vm400 = vcmp.eq.s32.totalorder %v125, %v358
    %vm401 = vcmp.eq.s32.totalorder %v125, %v361
    %vm402 = vcmp.eq.s32.totalorder %v125, %v364
    %vm403 = vcmp.eq.s32.totalorder %v125, %v367
    %vm404 = vcmp.eq.s32.totalorder %v125, %v370
    %vm405 = vcmp.eq.s32.totalorder %v125, %v373
    %vm406 = vcmp.eq.s32.totalorder %v125, %v376
    %vm407 = vcmp.eq.s32.totalorder %v125, %v379
    %vm408 = vcmp.eq.s32.totalorder %v125, %v382
    %vm409 = vcmp.eq.s32.totalorder %v125, %v385
    %vm410 = vcmp.eq.s32.totalorder %v125, %v388
    %vm411 = vcmp.eq.s32.totalorder %v125, %v391
    %vm412 = vcmp.eq.s32.totalorder %v125, %v394
    %vm413 = vcmp.eq.s32.totalorder %v125, %v397
    %v414 = vsel %vm334, 1, 0
    %v415 = vsel %vm335, 1, 0
    %v416 = vsel %vm336, 1, 0
    %v417 = vsel %vm337, 1, 0
    %v418 = vsel %vm338, 1, 0
    %v419 = vsel %vm339, 1, 0
    %v420 = vsel %vm340, 1, 0
    %v421 = vsel %vm341, 1, 0
    %v422 = vsel %vm342, 1, 0
    %v423 = vsel %vm343, 1, 0
    %v424 = vsel %vm344, 1, 0
    %v425 = vsel %vm345, 1, 0
    %v426 = vsel %vm346, 1, 0
    %v427 = vsel %vm347, 1, 0
    %v428 = vsel %vm348, 1, 0
    %v429 = vsel %vm349, 1, 0
    %430 = vset.pattern.permute.xlu0 0
    %431 = vperm.xlu0 %430, %v414
    %v432 = vpop.permute.xlu0 %431
    %433 = vset.pattern.permute.xlu0 0
    %434 = vperm.xlu0 %433, %v415
    %v435 = vpop.permute.xlu0 %434
    %436 = vset.pattern.permute.xlu0 0
    %437 = vperm.xlu0 %436, %v416
    %v438 = vpop.permute.xlu0 %437
    %439 = vset.pattern.permute.xlu0 0
    %440 = vperm.xlu0 %439, %v417
    %v441 = vpop.permute.xlu0 %440
    %442 = vset.pattern.permute.xlu0 0
    %443 = vperm.xlu0 %442, %v418
    %v444 = vpop.permute.xlu0 %443
    %445 = vset.pattern.permute.xlu0 0
    %446 = vperm.xlu0 %445, %v419
    %v447 = vpop.permute.xlu0 %446
    %448 = vset.pattern.permute.xlu0 0
    %449 = vperm.xlu0 %448, %v420
    %v450 = vpop.permute.xlu0 %449
    %451 = vset.pattern.permute.xlu0 0
    %452 = vperm.xlu0 %451, %v421
    %v453 = vpop.permute.xlu0 %452
    %454 = vset.pattern.permute.xlu0 0
    %455 = vperm.xlu0 %454, %v422
    %v456 = vpop.permute.xlu0 %455
    %457 = vset.pattern.permute.xlu0 0
    %458 = vperm.xlu0 %457, %v423
    %v459 = vpop.permute.xlu0 %458
    %460 = vset.pattern.permute.xlu0 0
    %461 = vperm.xlu0 %460, %v424
    %v462 = vpop.permute.xlu0 %461
    %463 = vset.pattern.permute.xlu0 0
    %464 = vperm.xlu0 %463, %v425
    %v465 = vpop.permute.xlu0 %464
    %466 = vset.pattern.permute.xlu0 0
    %467 = vperm.xlu0 %466, %v426
    %v468 = vpop.permute.xlu0 %467
    %469 = vset.pattern.permute.xlu0 0
    %470 = vperm.xlu0 %469, %v427
    %v471 = vpop.permute.xlu0 %470
    %472 = vset.pattern.permute.xlu0 0
    %473 = vperm.xlu0 %472, %v428
    %v474 = vpop.permute.xlu0 %473
    %475 = vset.pattern.permute.xlu0 0
    %476 = vperm.xlu0 %475, %v429
    %v477 = vpop.permute.xlu0 %476
    %vm478 = vcmp.eq.s32.totalorder %v432, 1
    %vm479 = vcmp.eq.s32.totalorder %v435, 1
    %vm480 = vcmp.eq.s32.totalorder %v438, 1
    %vm481 = vcmp.eq.s32.totalorder %v441, 1
    %vm482 = vcmp.eq.s32.totalorder %v444, 1
    %vm483 = vcmp.eq.s32.totalorder %v447, 1
    %vm484 = vcmp.eq.s32.totalorder %v450, 1
    %vm485 = vcmp.eq.s32.totalorder %v453, 1
    %vm486 = vcmp.eq.s32.totalorder %v456, 1
    %vm487 = vcmp.eq.s32.totalorder %v459, 1
    %vm488 = vcmp.eq.s32.totalorder %v462, 1
    %vm489 = vcmp.eq.s32.totalorder %v465, 1
    %vm490 = vcmp.eq.s32.totalorder %v468, 1
    %vm491 = vcmp.eq.s32.totalorder %v471, 1
    %vm492 = vcmp.eq.s32.totalorder %v474, 1
    %vm493 = vcmp.eq.s32.totalorder %v477, 1
    %vm494 = vmand %vm398, %vm478
    %vm495 = vmand %vm399, %vm479
    %vm496 = vmand %vm400, %vm480
    %vm497 = vmand %vm401, %vm481
    %vm498 = vmand %vm402, %vm482
    %vm499 = vmand %vm403, %vm483
    %vm500 = vmand %vm404, %vm484
    %vm501 = vmand %vm405, %vm485
    %vm502 = vmand %vm406, %vm486
    %vm503 = vmand %vm407, %vm487
    %vm504 = vmand %vm408, %vm488
    %vm505 = vmand %vm409, %vm489
    %vm506 = vmand %vm410, %vm490
    %vm507 = vmand %vm411, %vm491
    %vm508 = vmand %vm412, %vm492
    %vm509 = vmand %vm413, %vm493
    %v510 = vsel %vm494, 1.0, 0.0
    %v511 = vsel %vm495, 1.0, 0.0
    %v512 = vsel %vm496, 1.0, 0.0
    %v513 = vsel %vm497, 1.0, 0.0
    %v514 = vsel %vm498, 1.0, 0.0
    %v515 = vsel %vm499, 1.0, 0.0
    %v516 = vsel %vm500, 1.0, 0.0
    %v517 = vsel %vm501, 1.0, 0.0
    %v518 = vsel %vm502, 1.0, 0.0
    %v519 = vsel %vm503, 1.0, 0.0
    %v520 = vsel %vm504, 1.0, 0.0
    %v521 = vsel %vm505, 1.0, 0.0
    %v522 = vsel %vm506, 1.0, 0.0
    %v523 = vsel %vm507, 1.0, 0.0
    %v524 = vsel %vm508, 1.0, 0.0
    %v525 = vsel %vm509, 1.0, 0.0
    %v526 = vadd.f32 %v318, %v510
    %v527 = vadd.f32 %v319, %v511
    %v528 = vadd.f32 %v320, %v512
    %v529 = vadd.f32 %v321, %v513
    %v530 = vadd.f32 %v322, %v514
    %v531 = vadd.f32 %v323, %v515
    %v532 = vadd.f32 %v324, %v516
    %v533 = vadd.f32 %v325, %v517
    %v534 = vadd.f32 %v326, %v518
    %v535 = vadd.f32 %v327, %v519
    %v536 = vadd.f32 %v328, %v520
    %v537 = vadd.f32 %v329, %v521
    %v538 = vadd.f32 %v330, %v522
    %v539 = vadd.f32 %v331, %v523
    %v540 = vadd.f32 %v332, %v524
    %v541 = vadd.f32 %v333, %v525
    %vm542 = vcmp.gt.s32.totalorder %v108, 2
    %vm543 = vcmp.gt.s32.totalorder %v109, 2
    %vm544 = vcmp.gt.s32.totalorder %v110, 2
    %vm545 = vcmp.gt.s32.totalorder %v111, 2
    %vm546 = vcmp.gt.s32.totalorder %v112, 2
    %vm547 = vcmp.gt.s32.totalorder %v113, 2
    %vm548 = vcmp.gt.s32.totalorder %v114, 2
    %vm549 = vcmp.gt.s32.totalorder %v115, 2
    %vm550 = vcmp.gt.s32.totalorder %v116, 2
    %vm551 = vcmp.gt.s32.totalorder %v117, 2
    %vm552 = vcmp.gt.s32.totalorder %v118, 2
    %vm553 = vcmp.gt.s32.totalorder %v119, 2
    %vm554 = vcmp.gt.s32.totalorder %v120, 2
    %vm555 = vcmp.gt.s32.totalorder %v121, 2
    %vm556 = vcmp.gt.s32.totalorder %v122, 2
    %vm557 = vcmp.gt.s32.totalorder %v123, 2
    %558 = vset.pattern.permute.xlu0 2
    %559 = vperm.xlu0 %558, %v77
    %v560 = vpop.permute.xlu0 %559
    %561 = vset.pattern.permute.xlu0 2
    %562 = vperm.xlu0 %561, %v79
    %v563 = vpop.permute.xlu0 %562
    %564 = vset.pattern.permute.xlu0 2
    %565 = vperm.xlu0 %564, %v81
    %v566 = vpop.permute.xlu0 %565
    %567 = vset.pattern.permute.xlu0 2
    %568 = vperm.xlu0 %567, %v83
    %v569 = vpop.permute.xlu0 %568
    %570 = vset.pattern.permute.xlu0 2
    %571 = vperm.xlu0 %570, %v85
    %v572 = vpop.permute.xlu0 %571
    %573 = vset.pattern.permute.xlu0 2
    %574 = vperm.xlu0 %573, %v87
    %v575 = vpop.permute.xlu0 %574
    %576 = vset.pattern.permute.xlu0 2
    %577 = vperm.xlu0 %576, %v89
    %v578 = vpop.permute.xlu0 %577
    %579 = vset.pattern.permute.xlu0 2
    %580 = vperm.xlu0 %579, %v91
    %v581 = vpop.permute.xlu0 %580
    %582 = vset.pattern.permute.xlu0 2
    %583 = vperm.xlu0 %582, %v93
    %v584 = vpop.permute.xlu0 %583
    %585 = vset.pattern.permute.xlu0 2
    %586 = vperm.xlu0 %585, %v95
    %v587 = vpop.permute.xlu0 %586
    %588 = vset.pattern.permute.xlu0 2
    %589 = vperm.xlu0 %588, %v97
    %v590 = vpop.permute.xlu0 %589
    %591 = vset.pattern.permute.xlu0 2
    %592 = vperm.xlu0 %591, %v99
    %v593 = vpop.permute.xlu0 %592
    %594 = vset.pattern.permute.xlu0 2
    %595 = vperm.xlu0 %594, %v101
    %v596 = vpop.permute.xlu0 %595
    %597 = vset.pattern.permute.xlu0 2
    %598 = vperm.xlu0 %597, %v103
    %v599 = vpop.permute.xlu0 %598
    %600 = vset.pattern.permute.xlu0 2
    %601 = vperm.xlu0 %600, %v105
    %v602 = vpop.permute.xlu0 %601
    %603 = vset.pattern.permute.xlu0 2
    %604 = vperm.xlu0 %603, %v107
    %v605 = vpop.permute.xlu0 %604
    %vm606 = vcmp.eq.s32.totalorder %v125, %v560
    %vm607 = vcmp.eq.s32.totalorder %v125, %v563
    %vm608 = vcmp.eq.s32.totalorder %v125, %v566
    %vm609 = vcmp.eq.s32.totalorder %v125, %v569
    %vm610 = vcmp.eq.s32.totalorder %v125, %v572
    %vm611 = vcmp.eq.s32.totalorder %v125, %v575
    %vm612 = vcmp.eq.s32.totalorder %v125, %v578
    %vm613 = vcmp.eq.s32.totalorder %v125, %v581
    %vm614 = vcmp.eq.s32.totalorder %v125, %v584
    %vm615 = vcmp.eq.s32.totalorder %v125, %v587
    %vm616 = vcmp.eq.s32.totalorder %v125, %v590
    %vm617 = vcmp.eq.s32.totalorder %v125, %v593
    %vm618 = vcmp.eq.s32.totalorder %v125, %v596
    %vm619 = vcmp.eq.s32.totalorder %v125, %v599
    %vm620 = vcmp.eq.s32.totalorder %v125, %v602
    %vm621 = vcmp.eq.s32.totalorder %v125, %v605
    %v622 = vsel %vm542, 1, 0
    %v623 = vsel %vm543, 1, 0
    %v624 = vsel %vm544, 1, 0
    %v625 = vsel %vm545, 1, 0
    %v626 = vsel %vm546, 1, 0
    %v627 = vsel %vm547, 1, 0
    %v628 = vsel %vm548, 1, 0
    %v629 = vsel %vm549, 1, 0
    %v630 = vsel %vm550, 1, 0
    %v631 = vsel %vm551, 1, 0
    %v632 = vsel %vm552, 1, 0
    %v633 = vsel %vm553, 1, 0
    %v634 = vsel %vm554, 1, 0
    %v635 = vsel %vm555, 1, 0
    %v636 = vsel %vm556, 1, 0
    %v637 = vsel %vm557, 1, 0
    %638 = vset.pattern.permute.xlu0 0
    %639 = vperm.xlu0 %638, %v622
    %v640 = vpop.permute.xlu0 %639
    %641 = vset.pattern.permute.xlu0 0
    %642 = vperm.xlu0 %641, %v623
    %v643 = vpop.permute.xlu0 %642
    %644 = vset.pattern.permute.xlu0 0
    %645 = vperm.xlu0 %644, %v624
    %v646 = vpop.permute.xlu0 %645
    %647 = vset.pattern.permute.xlu0 0
    %648 = vperm.xlu0 %647, %v625
    %v649 = vpop.permute.xlu0 %648
    %650 = vset.pattern.permute.xlu0 0
    %651 = vperm.xlu0 %650, %v626
    %v652 = vpop.permute.xlu0 %651
    %653 = vset.pattern.permute.xlu0 0
    %654 = vperm.xlu0 %653, %v627
    %v655 = vpop.permute.xlu0 %654
    %656 = vset.pattern.permute.xlu0 0
    %657 = vperm.xlu0 %656, %v628
    %v658 = vpop.permute.xlu0 %657
    %659 = vset.pattern.permute.xlu0 0
    %660 = vperm.xlu0 %659, %v629
    %v661 = vpop.permute.xlu0 %660
    %662 = vset.pattern.permute.xlu0 0
    %663 = vperm.xlu0 %662, %v630
    %v664 = vpop.permute.xlu0 %663
    %665 = vset.pattern.permute.xlu0 0
    %666 = vperm.xlu0 %665, %v631
    %v667 = vpop.permute.xlu0 %666
    %668 = vset.pattern.permute.xlu0 0
    %669 = vperm.xlu0 %668, %v632
    %v670 = vpop.permute.xlu0 %669
    %671 = vset.pattern.permute.xlu0 0
    %672 = vperm.xlu0 %671, %v633
    %v673 = vpop.permute.xlu0 %672
    %674 = vset.pattern.permute.xlu0 0
    %675 = vperm.xlu0 %674, %v634
    %v676 = vpop.permute.xlu0 %675
    %677 = vset.pattern.permute.xlu0 0
    %678 = vperm.xlu0 %677, %v635
    %v679 = vpop.permute.xlu0 %678
    %680 = vset.pattern.permute.xlu0 0
    %681 = vperm.xlu0 %680, %v636
    %v682 = vpop.permute.xlu0 %681
    %683 = vset.pattern.permute.xlu0 0
    %684 = vperm.xlu0 %683, %v637
    %v685 = vpop.permute.xlu0 %684
    %vm686 = vcmp.eq.s32.totalorder %v640, 1
    %vm687 = vcmp.eq.s32.totalorder %v643, 1
    %vm688 = vcmp.eq.s32.totalorder %v646, 1
    %vm689 = vcmp.eq.s32.totalorder %v649, 1
    %vm690 = vcmp.eq.s32.totalorder %v652, 1
    %vm691 = vcmp.eq.s32.totalorder %v655, 1
    %vm692 = vcmp.eq.s32.totalorder %v658, 1
    %vm693 = vcmp.eq.s32.totalorder %v661, 1
    %vm694 = vcmp.eq.s32.totalorder %v664, 1
    %vm695 = vcmp.eq.s32.totalorder %v667, 1
    %vm696 = vcmp.eq.s32.totalorder %v670, 1
    %vm697 = vcmp.eq.s32.totalorder %v673, 1
    %vm698 = vcmp.eq.s32.totalorder %v676, 1
    %vm699 = vcmp.eq.s32.totalorder %v679, 1
    %vm700 = vcmp.eq.s32.totalorder %v682, 1
    %vm701 = vcmp.eq.s32.totalorder %v685, 1
    %vm702 = vmand %vm606, %vm686
    %vm703 = vmand %vm607, %vm687
    %vm704 = vmand %vm608, %vm688
    %vm705 = vmand %vm609, %vm689
    %vm706 = vmand %vm610, %vm690
    %vm707 = vmand %vm611, %vm691
    %vm708 = vmand %vm612, %vm692
    %vm709 = vmand %vm613, %vm693
    %vm710 = vmand %vm614, %vm694
    %vm711 = vmand %vm615, %vm695
    %vm712 = vmand %vm616, %vm696
    %vm713 = vmand %vm617, %vm697
    %vm714 = vmand %vm618, %vm698
    %vm715 = vmand %vm619, %vm699
    %vm716 = vmand %vm620, %vm700
    %vm717 = vmand %vm621, %vm701
    %v718 = vsel %vm702, 1.0, 0.0
    %v719 = vsel %vm703, 1.0, 0.0
    %v720 = vsel %vm704, 1.0, 0.0
    %v721 = vsel %vm705, 1.0, 0.0
    %v722 = vsel %vm706, 1.0, 0.0
    %v723 = vsel %vm707, 1.0, 0.0
    %v724 = vsel %vm708, 1.0, 0.0
    %v725 = vsel %vm709, 1.0, 0.0
    %v726 = vsel %vm710, 1.0, 0.0
    %v727 = vsel %vm711, 1.0, 0.0
    %v728 = vsel %vm712, 1.0, 0.0
    %v729 = vsel %vm713, 1.0, 0.0
    %v730 = vsel %vm714, 1.0, 0.0
    %v731 = vsel %vm715, 1.0, 0.0
    %v732 = vsel %vm716, 1.0, 0.0
    %v733 = vsel %vm717, 1.0, 0.0
    %v734 = vadd.f32 %v526, %v718
    %v735 = vadd.f32 %v527, %v719
    %v736 = vadd.f32 %v528, %v720
    %v737 = vadd.f32 %v529, %v721
    %v738 = vadd.f32 %v530, %v722
    %v739 = vadd.f32 %v531, %v723
    %v740 = vadd.f32 %v532, %v724
    %v741 = vadd.f32 %v533, %v725
    %v742 = vadd.f32 %v534, %v726
    %v743 = vadd.f32 %v535, %v727
    %v744 = vadd.f32 %v536, %v728
    %v745 = vadd.f32 %v537, %v729
    %v746 = vadd.f32 %v538, %v730
    %v747 = vadd.f32 %v539, %v731
    %v748 = vadd.f32 %v540, %v732
    %v749 = vadd.f32 %v541, %v733
    %vm750 = vcmp.gt.s32.totalorder %v108, 3
    %vm751 = vcmp.gt.s32.totalorder %v109, 3
    %vm752 = vcmp.gt.s32.totalorder %v110, 3
    %vm753 = vcmp.gt.s32.totalorder %v111, 3
    %vm754 = vcmp.gt.s32.totalorder %v112, 3
    %vm755 = vcmp.gt.s32.totalorder %v113, 3
    %vm756 = vcmp.gt.s32.totalorder %v114, 3
    %vm757 = vcmp.gt.s32.totalorder %v115, 3
    %vm758 = vcmp.gt.s32.totalorder %v116, 3
    %vm759 = vcmp.gt.s32.totalorder %v117, 3
    %vm760 = vcmp.gt.s32.totalorder %v118, 3
    %vm761 = vcmp.gt.s32.totalorder %v119, 3
    %vm762 = vcmp.gt.s32.totalorder %v120, 3
    %vm763 = vcmp.gt.s32.totalorder %v121, 3
    %vm764 = vcmp.gt.s32.totalorder %v122, 3
    %vm765 = vcmp.gt.s32.totalorder %v123, 3
    %766 = vset.pattern.permute.xlu0 3
    %767 = vperm.xlu0 %766, %v77
    %v768 = vpop.permute.xlu0 %767
    %769 = vset.pattern.permute.xlu0 3
    %770 = vperm.xlu0 %769, %v79
    %v771 = vpop.permute.xlu0 %770
    %772 = vset.pattern.permute.xlu0 3
    %773 = vperm.xlu0 %772, %v81
    %v774 = vpop.permute.xlu0 %773
    %775 = vset.pattern.permute.xlu0 3
    %776 = vperm.xlu0 %775, %v83
    %v777 = vpop.permute.xlu0 %776
    %778 = vset.pattern.permute.xlu0 3
    %779 = vperm.xlu0 %778, %v85
    %v780 = vpop.permute.xlu0 %779
    %781 = vset.pattern.permute.xlu0 3
    %782 = vperm.xlu0 %781, %v87
    %v783 = vpop.permute.xlu0 %782
    %784 = vset.pattern.permute.xlu0 3
    %785 = vperm.xlu0 %784, %v89
    %v786 = vpop.permute.xlu0 %785
    %787 = vset.pattern.permute.xlu0 3
    %788 = vperm.xlu0 %787, %v91
    %v789 = vpop.permute.xlu0 %788
    %790 = vset.pattern.permute.xlu0 3
    %791 = vperm.xlu0 %790, %v93
    %v792 = vpop.permute.xlu0 %791
    %793 = vset.pattern.permute.xlu0 3
    %794 = vperm.xlu0 %793, %v95
    %v795 = vpop.permute.xlu0 %794
    %796 = vset.pattern.permute.xlu0 3
    %797 = vperm.xlu0 %796, %v97
    %v798 = vpop.permute.xlu0 %797
    %799 = vset.pattern.permute.xlu0 3
    %800 = vperm.xlu0 %799, %v99
    %v801 = vpop.permute.xlu0 %800
    %802 = vset.pattern.permute.xlu0 3
    %803 = vperm.xlu0 %802, %v101
    %v804 = vpop.permute.xlu0 %803
    %805 = vset.pattern.permute.xlu0 3
    %806 = vperm.xlu0 %805, %v103
    %v807 = vpop.permute.xlu0 %806
    %808 = vset.pattern.permute.xlu0 3
    %809 = vperm.xlu0 %808, %v105
    %v810 = vpop.permute.xlu0 %809
    %811 = vset.pattern.permute.xlu0 3
    %812 = vperm.xlu0 %811, %v107
    %v813 = vpop.permute.xlu0 %812
    %vm814 = vcmp.eq.s32.totalorder %v125, %v768
    %vm815 = vcmp.eq.s32.totalorder %v125, %v771
    %vm816 = vcmp.eq.s32.totalorder %v125, %v774
    %vm817 = vcmp.eq.s32.totalorder %v125, %v777
    %vm818 = vcmp.eq.s32.totalorder %v125, %v780
    %vm819 = vcmp.eq.s32.totalorder %v125, %v783
    %vm820 = vcmp.eq.s32.totalorder %v125, %v786
    %vm821 = vcmp.eq.s32.totalorder %v125, %v789
    %vm822 = vcmp.eq.s32.totalorder %v125, %v792
    %vm823 = vcmp.eq.s32.totalorder %v125, %v795
    %vm824 = vcmp.eq.s32.totalorder %v125, %v798
    %vm825 = vcmp.eq.s32.totalorder %v125, %v801
    %vm826 = vcmp.eq.s32.totalorder %v125, %v804
    %vm827 = vcmp.eq.s32.totalorder %v125, %v807
    %vm828 = vcmp.eq.s32.totalorder %v125, %v810
    %vm829 = vcmp.eq.s32.totalorder %v125, %v813
    %v830 = vsel %vm750, 1, 0
    %v831 = vsel %vm751, 1, 0
    %v832 = vsel %vm752, 1, 0
    %v833 = vsel %vm753, 1, 0
    %v834 = vsel %vm754, 1, 0
    %v835 = vsel %vm755, 1, 0
    %v836 = vsel %vm756, 1, 0
    %v837 = vsel %vm757, 1, 0
    %v838 = vsel %vm758, 1, 0
    %v839 = vsel %vm759, 1, 0
    %v840 = vsel %vm760, 1, 0
    %v841 = vsel %vm761, 1, 0
    %v842 = vsel %vm762, 1, 0
    %v843 = vsel %vm763, 1, 0
    %v844 = vsel %vm764, 1, 0
    %v845 = vsel %vm765, 1, 0
    %846 = vset.pattern.permute.xlu0 0
    %847 = vperm.xlu0 %846, %v830
    %v848 = vpop.permute.xlu0 %847
    %849 = vset.pattern.permute.xlu0 0
    %850 = vperm.xlu0 %849, %v831
    %v851 = vpop.permute.xlu0 %850
    %852 = vset.pattern.permute.xlu0 0
    %853 = vperm.xlu0 %852, %v832
    %v854 = vpop.permute.xlu0 %853
    %855 = vset.pattern.permute.xlu0 0
    %856 = vperm.xlu0 %855, %v833
    %v857 = vpop.permute.xlu0 %856
    %858 = vset.pattern.permute.xlu0 0
    %859 = vperm.xlu0 %858, %v834
    %v860 = vpop.permute.xlu0 %859
    %861 = vset.pattern.permute.xlu0 0
    %862 = vperm.xlu0 %861, %v835
    %v863 = vpop.permute.xlu0 %862
    %864 = vset.pattern.permute.xlu0 0
    %865 = vperm.xlu0 %864, %v836
    %v866 = vpop.permute.xlu0 %865
    %867 = vset.pattern.permute.xlu0 0
    %868 = vperm.xlu0 %867, %v837
    %v869 = vpop.permute.xlu0 %868
    %870 = vset.pattern.permute.xlu0 0
    %871 = vperm.xlu0 %870, %v838
    %v872 = vpop.permute.xlu0 %871
    %873 = vset.pattern.permute.xlu0 0
    %874 = vperm.xlu0 %873, %v839
    %v875 = vpop.permute.xlu0 %874
    %876 = vset.pattern.permute.xlu0 0
    %877 = vperm.xlu0 %876, %v840
    %v878 = vpop.permute.xlu0 %877
    %879 = vset.pattern.permute.xlu0 0
    %880 = vperm.xlu0 %879, %v841
    %v881 = vpop.permute.xlu0 %880
    %882 = vset.pattern.permute.xlu0 0
    %883 = vperm.xlu0 %882, %v842
    %v884 = vpop.permute.xlu0 %883
    %885 = vset.pattern.permute.xlu0 0
    %886 = vperm.xlu0 %885, %v843
    %v887 = vpop.permute.xlu0 %886
    %888 = vset.pattern.permute.xlu0 0
    %889 = vperm.xlu0 %888, %v844
    %v890 = vpop.permute.xlu0 %889
    %891 = vset.pattern.permute.xlu0 0
    %892 = vperm.xlu0 %891, %v845
    %v893 = vpop.permute.xlu0 %892
    %vm894 = vcmp.eq.s32.totalorder %v848, 1
    %vm895 = vcmp.eq.s32.totalorder %v851, 1
    %vm896 = vcmp.eq.s32.totalorder %v854, 1
    %vm897 = vcmp.eq.s32.totalorder %v857, 1
    %vm898 = vcmp.eq.s32.totalorder %v860, 1
    %vm899 = vcmp.eq.s32.totalorder %v863, 1
    %vm900 = vcmp.eq.s32.totalorder %v866, 1
    %vm901 = vcmp.eq.s32.totalorder %v869, 1
    %vm902 = vcmp.eq.s32.totalorder %v872, 1
    %vm903 = vcmp.eq.s32.totalorder %v875, 1
    %vm904 = vcmp.eq.s32.totalorder %v878, 1
    %vm905 = vcmp.eq.s32.totalorder %v881, 1
    %vm906 = vcmp.eq.s32.totalorder %v884, 1
    %vm907 = vcmp.eq.s32.totalorder %v887, 1
    %vm908 = vcmp.eq.s32.totalorder %v890, 1
    %vm909 = vcmp.eq.s32.totalorder %v893, 1
    %vm910 = vmand %vm814, %vm894
    %vm911 = vmand %vm815, %vm895
    %vm912 = vmand %vm816, %vm896
    %vm913 = vmand %vm817, %vm897
    %vm914 = vmand %vm818, %vm898
    %vm915 = vmand %vm819, %vm899
    %vm916 = vmand %vm820, %vm900
    %vm917 = vmand %vm821, %vm901
    %vm918 = vmand %vm822, %vm902
    %vm919 = vmand %vm823, %vm903
    %vm920 = vmand %vm824, %vm904
    %vm921 = vmand %vm825, %vm905
    %vm922 = vmand %vm826, %vm906
    %vm923 = vmand %vm827, %vm907
    %vm924 = vmand %vm828, %vm908
    %vm925 = vmand %vm829, %vm909
    %v926 = vsel %vm910, 1.0, 0.0
    %v927 = vsel %vm911, 1.0, 0.0
    %v928 = vsel %vm912, 1.0, 0.0
    %v929 = vsel %vm913, 1.0, 0.0
    %v930 = vsel %vm914, 1.0, 0.0
    %v931 = vsel %vm915, 1.0, 0.0
    %v932 = vsel %vm916, 1.0, 0.0
    %v933 = vsel %vm917, 1.0, 0.0
    %v934 = vsel %vm918, 1.0, 0.0
    %v935 = vsel %vm919, 1.0, 0.0
    %v936 = vsel %vm920, 1.0, 0.0
    %v937 = vsel %vm921, 1.0, 0.0
    %v938 = vsel %vm922, 1.0, 0.0
    %v939 = vsel %vm923, 1.0, 0.0
    %v940 = vsel %vm924, 1.0, 0.0
    %v941 = vsel %vm925, 1.0, 0.0
    %v942 = vadd.f32 %v734, %v926
    %v943 = vadd.f32 %v735, %v927
    %v944 = vadd.f32 %v736, %v928
    %v945 = vadd.f32 %v737, %v929
    %v946 = vadd.f32 %v738, %v930
    %v947 = vadd.f32 %v739, %v931
    %v948 = vadd.f32 %v740, %v932
    %v949 = vadd.f32 %v741, %v933
    %v950 = vadd.f32 %v742, %v934
    %v951 = vadd.f32 %v743, %v935
    %v952 = vadd.f32 %v744, %v936
    %v953 = vadd.f32 %v745, %v937
    %v954 = vadd.f32 %v746, %v938
    %v955 = vadd.f32 %v747, %v939
    %v956 = vadd.f32 %v748, %v940
    %v957 = vadd.f32 %v749, %v941
    %vm958 = vcmp.gt.s32.totalorder %v108, 4
    %vm959 = vcmp.gt.s32.totalorder %v109, 4
    %vm960 = vcmp.gt.s32.totalorder %v110, 4
    %vm961 = vcmp.gt.s32.totalorder %v111, 4
    %vm962 = vcmp.gt.s32.totalorder %v112, 4
    %vm963 = vcmp.gt.s32.totalorder %v113, 4
    %vm964 = vcmp.gt.s32.totalorder %v114, 4
    %vm965 = vcmp.gt.s32.totalorder %v115, 4
    %vm966 = vcmp.gt.s32.totalorder %v116, 4
    %vm967 = vcmp.gt.s32.totalorder %v117, 4
    %vm968 = vcmp.gt.s32.totalorder %v118, 4
    %vm969 = vcmp.gt.s32.totalorder %v119, 4
    %vm970 = vcmp.gt.s32.totalorder %v120, 4
    %vm971 = vcmp.gt.s32.totalorder %v121, 4
    %vm972 = vcmp.gt.s32.totalorder %v122, 4
    %vm973 = vcmp.gt.s32.totalorder %v123, 4
    %974 = vset.pattern.permute.xlu0 4
    %975 = vperm.xlu0 %974, %v77
    %v976 = vpop.permute.xlu0 %975
    %977 = vset.pattern.permute.xlu0 4
    %978 = vperm.xlu0 %977, %v79
    %v979 = vpop.permute.xlu0 %978
    %980 = vset.pattern.permute.xlu0 4
    %981 = vperm.xlu0 %980, %v81
    %v982 = vpop.permute.xlu0 %981
    %983 = vset.pattern.permute.xlu0 4
    %984 = vperm.xlu0 %983, %v83
    %v985 = vpop.permute.xlu0 %984
    %986 = vset.pattern.permute.xlu0 4
    %987 = vperm.xlu0 %986, %v85
    %v988 = vpop.permute.xlu0 %987
    %989 = vset.pattern.permute.xlu0 4
    %990 = vperm.xlu0 %989, %v87
    %v991 = vpop.permute.xlu0 %990
    %992 = vset.pattern.permute.xlu0 4
    %993 = vperm.xlu0 %992, %v89
    %v994 = vpop.permute.xlu0 %993
    %995 = vset.pattern.permute.xlu0 4
    %996 = vperm.xlu0 %995, %v91
    %v997 = vpop.permute.xlu0 %996
    %998 = vset.pattern.permute.xlu0 4
    %999 = vperm.xlu0 %998, %v93
    %v1000 = vpop.permute.xlu0 %999
    %1001 = vset.pattern.permute.xlu0 4
    %1002 = vperm.xlu0 %1001, %v95
    %v1003 = vpop.permute.xlu0 %1002
    %1004 = vset.pattern.permute.xlu0 4
    %1005 = vperm.xlu0 %1004, %v97
    %v1006 = vpop.permute.xlu0 %1005
    %1007 = vset.pattern.permute.xlu0 4
    %1008 = vperm.xlu0 %1007, %v99
    %v1009 = vpop.permute.xlu0 %1008
    %1010 = vset.pattern.permute.xlu0 4
    %1011 = vperm.xlu0 %1010, %v101
    %v1012 = vpop.permute.xlu0 %1011
    %1013 = vset.pattern.permute.xlu0 4
    %1014 = vperm.xlu0 %1013, %v103
    %v1015 = vpop.permute.xlu0 %1014
    %1016 = vset.pattern.permute.xlu0 4
    %1017 = vperm.xlu0 %1016, %v105
    %v1018 = vpop.permute.xlu0 %1017
    %1019 = vset.pattern.permute.xlu0 4
    %1020 = vperm.xlu0 %1019, %v107
    %v1021 = vpop.permute.xlu0 %1020
    %vm1022 = vcmp.eq.s32.totalorder %v125, %v976
    %vm1023 = vcmp.eq.s32.totalorder %v125, %v979
    %vm1024 = vcmp.eq.s32.totalorder %v125, %v982
    %vm1025 = vcmp.eq.s32.totalorder %v125, %v985
    %vm1026 = vcmp.eq.s32.totalorder %v125, %v988
    %vm1027 = vcmp.eq.s32.totalorder %v125, %v991
    %vm1028 = vcmp.eq.s32.totalorder %v125, %v994
    %vm1029 = vcmp.eq.s32.totalorder %v125, %v997
    %vm1030 = vcmp.eq.s32.totalorder %v125, %v1000
    %vm1031 = vcmp.eq.s32.totalorder %v125, %v1003
    %vm1032 = vcmp.eq.s32.totalorder %v125, %v1006
    %vm1033 = vcmp.eq.s32.totalorder %v125, %v1009
    %vm1034 = vcmp.eq.s32.totalorder %v125, %v1012
    %vm1035 = vcmp.eq.s32.totalorder %v125, %v1015
    %vm1036 = vcmp.eq.s32.totalorder %v125, %v1018
    %vm1037 = vcmp.eq.s32.totalorder %v125, %v1021
    %v1038 = vsel %vm958, 1, 0
    %v1039 = vsel %vm959, 1, 0
    %v1040 = vsel %vm960, 1, 0
    %v1041 = vsel %vm961, 1, 0
    %v1042 = vsel %vm962, 1, 0
    %v1043 = vsel %vm963, 1, 0
    %v1044 = vsel %vm964, 1, 0
    %v1045 = vsel %vm965, 1, 0
    %v1046 = vsel %vm966, 1, 0
    %v1047 = vsel %vm967, 1, 0
    %v1048 = vsel %vm968, 1, 0
    %v1049 = vsel %vm969, 1, 0
    %v1050 = vsel %vm970, 1, 0
    %v1051 = vsel %vm971, 1, 0
    %v1052 = vsel %vm972, 1, 0
    %v1053 = vsel %vm973, 1, 0
    %1054 = vset.pattern.permute.xlu0 0
    %1055 = vperm.xlu0 %1054, %v1038
    %v1056 = vpop.permute.xlu0 %1055
    %1057 = vset.pattern.permute.xlu0 0
    %1058 = vperm.xlu0 %1057, %v1039
    %v1059 = vpop.permute.xlu0 %1058
    %1060 = vset.pattern.permute.xlu0 0
    %1061 = vperm.xlu0 %1060, %v1040
    %v1062 = vpop.permute.xlu0 %1061
    %1063 = vset.pattern.permute.xlu0 0
    %1064 = vperm.xlu0 %1063, %v1041
    %v1065 = vpop.permute.xlu0 %1064
    %1066 = vset.pattern.permute.xlu0 0
    %1067 = vperm.xlu0 %1066, %v1042
    %v1068 = vpop.permute.xlu0 %1067
    %1069 = vset.pattern.permute.xlu0 0
    %1070 = vperm.xlu0 %1069, %v1043
    %v1071 = vpop.permute.xlu0 %1070
    %1072 = vset.pattern.permute.xlu0 0
    %1073 = vperm.xlu0 %1072, %v1044
    %v1074 = vpop.permute.xlu0 %1073
    %1075 = vset.pattern.permute.xlu0 0
    %1076 = vperm.xlu0 %1075, %v1045
    %v1077 = vpop.permute.xlu0 %1076
    %1078 = vset.pattern.permute.xlu0 0
    %1079 = vperm.xlu0 %1078, %v1046
    %v1080 = vpop.permute.xlu0 %1079
    %1081 = vset.pattern.permute.xlu0 0
    %1082 = vperm.xlu0 %1081, %v1047
    %v1083 = vpop.permute.xlu0 %1082
    %1084 = vset.pattern.permute.xlu0 0
    %1085 = vperm.xlu0 %1084, %v1048
    %v1086 = vpop.permute.xlu0 %1085
    %1087 = vset.pattern.permute.xlu0 0
    %1088 = vperm.xlu0 %1087, %v1049
    %v1089 = vpop.permute.xlu0 %1088
    %1090 = vset.pattern.permute.xlu0 0
    %1091 = vperm.xlu0 %1090, %v1050
    %v1092 = vpop.permute.xlu0 %1091
    %1093 = vset.pattern.permute.xlu0 0
    %1094 = vperm.xlu0 %1093, %v1051
    %v1095 = vpop.permute.xlu0 %1094
    %1096 = vset.pattern.permute.xlu0 0
    %1097 = vperm.xlu0 %1096, %v1052
    %v1098 = vpop.permute.xlu0 %1097
    %1099 = vset.pattern.permute.xlu0 0
    %1100 = vperm.xlu0 %1099, %v1053
    %v1101 = vpop.permute.xlu0 %1100
    %vm1102 = vcmp.eq.s32.totalorder %v1056, 1
    %vm1103 = vcmp.eq.s32.totalorder %v1059, 1
    %vm1104 = vcmp.eq.s32.totalorder %v1062, 1
    %vm1105 = vcmp.eq.s32.totalorder %v1065, 1
    %vm1106 = vcmp.eq.s32.totalorder %v1068, 1
    %vm1107 = vcmp.eq.s32.totalorder %v1071, 1
    %vm1108 = vcmp.eq.s32.totalorder %v1074, 1
    %vm1109 = vcmp.eq.s32.totalorder %v1077, 1
    %vm1110 = vcmp.eq.s32.totalorder %v1080, 1
    %vm1111 = vcmp.eq.s32.totalorder %v1083, 1
    %vm1112 = vcmp.eq.s32.totalorder %v1086, 1
    %vm1113 = vcmp.eq.s32.totalorder %v1089, 1
    %vm1114 = vcmp.eq.s32.totalorder %v1092, 1
    %vm1115 = vcmp.eq.s32.totalorder %v1095, 1
    %vm1116 = vcmp.eq.s32.totalorder %v1098, 1
    %vm1117 = vcmp.eq.s32.totalorder %v1101, 1
    %vm1118 = vmand %vm1022, %vm1102
    %vm1119 = vmand %vm1023, %vm1103
    %vm1120 = vmand %vm1024, %vm1104
    %vm1121 = vmand %vm1025, %vm1105
    %vm1122 = vmand %vm1026, %vm1106
    %vm1123 = vmand %vm1027, %vm1107
    %vm1124 = vmand %vm1028, %vm1108
    %vm1125 = vmand %vm1029, %vm1109
    %vm1126 = vmand %vm1030, %vm1110
    %vm1127 = vmand %vm1031, %vm1111
    %vm1128 = vmand %vm1032, %vm1112
    %vm1129 = vmand %vm1033, %vm1113
    %vm1130 = vmand %vm1034, %vm1114
    %vm1131 = vmand %vm1035, %vm1115
    %vm1132 = vmand %vm1036, %vm1116
    %vm1133 = vmand %vm1037, %vm1117
    %v1134 = vsel %vm1118, 1.0, 0.0
    %v1135 = vsel %vm1119, 1.0, 0.0
    %v1136 = vsel %vm1120, 1.0, 0.0
    %v1137 = vsel %vm1121, 1.0, 0.0
    %v1138 = vsel %vm1122, 1.0, 0.0
    %v1139 = vsel %vm1123, 1.0, 0.0
    %v1140 = vsel %vm1124, 1.0, 0.0
    %v1141 = vsel %vm1125, 1.0, 0.0
    %v1142 = vsel %vm1126, 1.0, 0.0
    %v1143 = vsel %vm1127, 1.0, 0.0
    %v1144 = vsel %vm1128, 1.0, 0.0
    %v1145 = vsel %vm1129, 1.0, 0.0
    %v1146 = vsel %vm1130, 1.0, 0.0
    %v1147 = vsel %vm1131, 1.0, 0.0
    %v1148 = vsel %vm1132, 1.0, 0.0
    %v1149 = vsel %vm1133, 1.0, 0.0
    %v1150 = vadd.f32 %v942, %v1134
    %v1151 = vadd.f32 %v943, %v1135
    %v1152 = vadd.f32 %v944, %v1136
    %v1153 = vadd.f32 %v945, %v1137
    %v1154 = vadd.f32 %v946, %v1138
    %v1155 = vadd.f32 %v947, %v1139
    %v1156 = vadd.f32 %v948, %v1140
    %v1157 = vadd.f32 %v949, %v1141
    %v1158 = vadd.f32 %v950, %v1142
    %v1159 = vadd.f32 %v951, %v1143
    %v1160 = vadd.f32 %v952, %v1144
    %v1161 = vadd.f32 %v953, %v1145
    %v1162 = vadd.f32 %v954, %v1146
    %v1163 = vadd.f32 %v955, %v1147
    %v1164 = vadd.f32 %v956, %v1148
    %v1165 = vadd.f32 %v957, %v1149
    %vm1166 = vcmp.gt.s32.totalorder %v108, 5
    %vm1167 = vcmp.gt.s32.totalorder %v109, 5
    %vm1168 = vcmp.gt.s32.totalorder %v110, 5
    %vm1169 = vcmp.gt.s32.totalorder %v111, 5
    %vm1170 = vcmp.gt.s32.totalorder %v112, 5
    %vm1171 = vcmp.gt.s32.totalorder %v113, 5
    %vm1172 = vcmp.gt.s32.totalorder %v114, 5
    %vm1173 = vcmp.gt.s32.totalorder %v115, 5
    %vm1174 = vcmp.gt.s32.totalorder %v116, 5
    %vm1175 = vcmp.gt.s32.totalorder %v117, 5
    %vm1176 = vcmp.gt.s32.totalorder %v118, 5
    %vm1177 = vcmp.gt.s32.totalorder %v119, 5
    %vm1178 = vcmp.gt.s32.totalorder %v120, 5
    %vm1179 = vcmp.gt.s32.totalorder %v121, 5
    %vm1180 = vcmp.gt.s32.totalorder %v122, 5
    %vm1181 = vcmp.gt.s32.totalorder %v123, 5
    %1182 = vset.pattern.permute.xlu0 5
    %1183 = vperm.xlu0 %1182, %v77
    %v1184 = vpop.permute.xlu0 %1183
    %1185 = vset.pattern.permute.xlu0 5
    %1186 = vperm.xlu0 %1185, %v79
    %v1187 = vpop.permute.xlu0 %1186
    %1188 = vset.pattern.permute.xlu0 5
    %1189 = vperm.xlu0 %1188, %v81
    %v1190 = vpop.permute.xlu0 %1189
    %1191 = vset.pattern.permute.xlu0 5
    %1192 = vperm.xlu0 %1191, %v83
    %v1193 = vpop.permute.xlu0 %1192
    %1194 = vset.pattern.permute.xlu0 5
    %1195 = vperm.xlu0 %1194, %v85
    %v1196 = vpop.permute.xlu0 %1195
    %1197 = vset.pattern.permute.xlu0 5
    %1198 = vperm.xlu0 %1197, %v87
    %v1199 = vpop.permute.xlu0 %1198
    %1200 = vset.pattern.permute.xlu0 5
    %1201 = vperm.xlu0 %1200, %v89
    %v1202 = vpop.permute.xlu0 %1201
    %1203 = vset.pattern.permute.xlu0 5
    %1204 = vperm.xlu0 %1203, %v91
    %v1205 = vpop.permute.xlu0 %1204
    %1206 = vset.pattern.permute.xlu0 5
    %1207 = vperm.xlu0 %1206, %v93
    %v1208 = vpop.permute.xlu0 %1207
    %1209 = vset.pattern.permute.xlu0 5
    %1210 = vperm.xlu0 %1209, %v95
    %v1211 = vpop.permute.xlu0 %1210
    %1212 = vset.pattern.permute.xlu0 5
    %1213 = vperm.xlu0 %1212, %v97
    %v1214 = vpop.permute.xlu0 %1213
    %1215 = vset.pattern.permute.xlu0 5
    %1216 = vperm.xlu0 %1215, %v99
    %v1217 = vpop.permute.xlu0 %1216
    %1218 = vset.pattern.permute.xlu0 5
    %1219 = vperm.xlu0 %1218, %v101
    %v1220 = vpop.permute.xlu0 %1219
    %1221 = vset.pattern.permute.xlu0 5
    %1222 = vperm.xlu0 %1221, %v103
    %v1223 = vpop.permute.xlu0 %1222
    %1224 = vset.pattern.permute.xlu0 5
    %1225 = vperm.xlu0 %1224, %v105
    %v1226 = vpop.permute.xlu0 %1225
    %1227 = vset.pattern.permute.xlu0 5
    %1228 = vperm.xlu0 %1227, %v107
    %v1229 = vpop.permute.xlu0 %1228
    %vm1230 = vcmp.eq.s32.totalorder %v125, %v1184
    %vm1231 = vcmp.eq.s32.totalorder %v125, %v1187
    %vm1232 = vcmp.eq.s32.totalorder %v125, %v1190
    %vm1233 = vcmp.eq.s32.totalorder %v125, %v1193
    %vm1234 = vcmp.eq.s32.totalorder %v125, %v1196
    %vm1235 = vcmp.eq.s32.totalorder %v125, %v1199
    %vm1236 = vcmp.eq.s32.totalorder %v125, %v1202
    %vm1237 = vcmp.eq.s32.totalorder %v125, %v1205
    %vm1238 = vcmp.eq.s32.totalorder %v125, %v1208
    %vm1239 = vcmp.eq.s32.totalorder %v125, %v1211
    %vm1240 = vcmp.eq.s32.totalorder %v125, %v1214
    %vm1241 = vcmp.eq.s32.totalorder %v125, %v1217
    %vm1242 = vcmp.eq.s32.totalorder %v125, %v1220
    %vm1243 = vcmp.eq.s32.totalorder %v125, %v1223
    %vm1244 = vcmp.eq.s32.totalorder %v125, %v1226
    %vm1245 = vcmp.eq.s32.totalorder %v125, %v1229
    %v1246 = vsel %vm1166, 1, 0
    %v1247 = vsel %vm1167, 1, 0
    %v1248 = vsel %vm1168, 1, 0
    %v1249 = vsel %vm1169, 1, 0
    %v1250 = vsel %vm1170, 1, 0
    %v1251 = vsel %vm1171, 1, 0
    %v1252 = vsel %vm1172, 1, 0
    %v1253 = vsel %vm1173, 1, 0
    %v1254 = vsel %vm1174, 1, 0
    %v1255 = vsel %vm1175, 1, 0
    %v1256 = vsel %vm1176, 1, 0
    %v1257 = vsel %vm1177, 1, 0
    %v1258 = vsel %vm1178, 1, 0
    %v1259 = vsel %vm1179, 1, 0
    %v1260 = vsel %vm1180, 1, 0
    %v1261 = vsel %vm1181, 1, 0
    %1262 = vset.pattern.permute.xlu0 0
    %1263 = vperm.xlu0 %1262, %v1246
    %v1264 = vpop.permute.xlu0 %1263
    %1265 = vset.pattern.permute.xlu0 0
    %1266 = vperm.xlu0 %1265, %v1247
    %v1267 = vpop.permute.xlu0 %1266
    %1268 = vset.pattern.permute.xlu0 0
    %1269 = vperm.xlu0 %1268, %v1248
    %v1270 = vpop.permute.xlu0 %1269
    %1271 = vset.pattern.permute.xlu0 0
    %1272 = vperm.xlu0 %1271, %v1249
    %v1273 = vpop.permute.xlu0 %1272
    %1274 = vset.pattern.permute.xlu0 0
    %1275 = vperm.xlu0 %1274, %v1250
    %v1276 = vpop.permute.xlu0 %1275
    %1277 = vset.pattern.permute.xlu0 0
    %1278 = vperm.xlu0 %1277, %v1251
    %v1279 = vpop.permute.xlu0 %1278
    %1280 = vset.pattern.permute.xlu0 0
    %1281 = vperm.xlu0 %1280, %v1252
    %v1282 = vpop.permute.xlu0 %1281
    %1283 = vset.pattern.permute.xlu0 0
    %1284 = vperm.xlu0 %1283, %v1253
    %v1285 = vpop.permute.xlu0 %1284
    %1286 = vset.pattern.permute.xlu0 0
    %1287 = vperm.xlu0 %1286, %v1254
    %v1288 = vpop.permute.xlu0 %1287
    %1289 = vset.pattern.permute.xlu0 0
    %1290 = vperm.xlu0 %1289, %v1255
    %v1291 = vpop.permute.xlu0 %1290
    %1292 = vset.pattern.permute.xlu0 0
    %1293 = vperm.xlu0 %1292, %v1256
    %v1294 = vpop.permute.xlu0 %1293
    %1295 = vset.pattern.permute.xlu0 0
    %1296 = vperm.xlu0 %1295, %v1257
    %v1297 = vpop.permute.xlu0 %1296
    %1298 = vset.pattern.permute.xlu0 0
    %1299 = vperm.xlu0 %1298, %v1258
    %v1300 = vpop.permute.xlu0 %1299
    %1301 = vset.pattern.permute.xlu0 0
    %1302 = vperm.xlu0 %1301, %v1259
    %v1303 = vpop.permute.xlu0 %1302
    %1304 = vset.pattern.permute.xlu0 0
    %1305 = vperm.xlu0 %1304, %v1260
    %v1306 = vpop.permute.xlu0 %1305
    %1307 = vset.pattern.permute.xlu0 0
    %1308 = vperm.xlu0 %1307, %v1261
    %v1309 = vpop.permute.xlu0 %1308
    %vm1310 = vcmp.eq.s32.totalorder %v1264, 1
    %vm1311 = vcmp.eq.s32.totalorder %v1267, 1
    %vm1312 = vcmp.eq.s32.totalorder %v1270, 1
    %vm1313 = vcmp.eq.s32.totalorder %v1273, 1
    %vm1314 = vcmp.eq.s32.totalorder %v1276, 1
    %vm1315 = vcmp.eq.s32.totalorder %v1279, 1
    %vm1316 = vcmp.eq.s32.totalorder %v1282, 1
    %vm1317 = vcmp.eq.s32.totalorder %v1285, 1
    %vm1318 = vcmp.eq.s32.totalorder %v1288, 1
    %vm1319 = vcmp.eq.s32.totalorder %v1291, 1
    %vm1320 = vcmp.eq.s32.totalorder %v1294, 1
    %vm1321 = vcmp.eq.s32.totalorder %v1297, 1
    %vm1322 = vcmp.eq.s32.totalorder %v1300, 1
    %vm1323 = vcmp.eq.s32.totalorder %v1303, 1
    %vm1324 = vcmp.eq.s32.totalorder %v1306, 1
    %vm1325 = vcmp.eq.s32.totalorder %v1309, 1
    %vm1326 = vmand %vm1230, %vm1310
    %vm1327 = vmand %vm1231, %vm1311
    %vm1328 = vmand %vm1232, %vm1312
    %vm1329 = vmand %vm1233, %vm1313
    %vm1330 = vmand %vm1234, %vm1314
    %vm1331 = vmand %vm1235, %vm1315
    %vm1332 = vmand %vm1236, %vm1316
    %vm1333 = vmand %vm1237, %vm1317
    %vm1334 = vmand %vm1238, %vm1318
    %vm1335 = vmand %vm1239, %vm1319
    %vm1336 = vmand %vm1240, %vm1320
    %vm1337 = vmand %vm1241, %vm1321
    %vm1338 = vmand %vm1242, %vm1322
    %vm1339 = vmand %vm1243, %vm1323
    %vm1340 = vmand %vm1244, %vm1324
    %vm1341 = vmand %vm1245, %vm1325
    %v1342 = vsel %vm1326, 1.0, 0.0
    %v1343 = vsel %vm1327, 1.0, 0.0
    %v1344 = vsel %vm1328, 1.0, 0.0
    %v1345 = vsel %vm1329, 1.0, 0.0
    %v1346 = vsel %vm1330, 1.0, 0.0
    %v1347 = vsel %vm1331, 1.0, 0.0
    %v1348 = vsel %vm1332, 1.0, 0.0
    %v1349 = vsel %vm1333, 1.0, 0.0
    %v1350 = vsel %vm1334, 1.0, 0.0
    %v1351 = vsel %vm1335, 1.0, 0.0
    %v1352 = vsel %vm1336, 1.0, 0.0
    %v1353 = vsel %vm1337, 1.0, 0.0
    %v1354 = vsel %vm1338, 1.0, 0.0
    %v1355 = vsel %vm1339, 1.0, 0.0
    %v1356 = vsel %vm1340, 1.0, 0.0
    %v1357 = vsel %vm1341, 1.0, 0.0
    %v1358 = vadd.f32 %v1150, %v1342
    %v1359 = vadd.f32 %v1151, %v1343
    %v1360 = vadd.f32 %v1152, %v1344
    %v1361 = vadd.f32 %v1153, %v1345
    %v1362 = vadd.f32 %v1154, %v1346
    %v1363 = vadd.f32 %v1155, %v1347
    %v1364 = vadd.f32 %v1156, %v1348
    %v1365 = vadd.f32 %v1157, %v1349
    %v1366 = vadd.f32 %v1158, %v1350
    %v1367 = vadd.f32 %v1159, %v1351
    %v1368 = vadd.f32 %v1160, %v1352
    %v1369 = vadd.f32 %v1161, %v1353
    %v1370 = vadd.f32 %v1162, %v1354
    %v1371 = vadd.f32 %v1163, %v1355
    %v1372 = vadd.f32 %v1164, %v1356
    %v1373 = vadd.f32 %v1165, %v1357
    %vm1374 = vcmp.gt.s32.totalorder %v108, 6
    %vm1375 = vcmp.gt.s32.totalorder %v109, 6
    %vm1376 = vcmp.gt.s32.totalorder %v110, 6
    %vm1377 = vcmp.gt.s32.totalorder %v111, 6
    %vm1378 = vcmp.gt.s32.totalorder %v112, 6
    %vm1379 = vcmp.gt.s32.totalorder %v113, 6
    %vm1380 = vcmp.gt.s32.totalorder %v114, 6
    %vm1381 = vcmp.gt.s32.totalorder %v115, 6
    %vm1382 = vcmp.gt.s32.totalorder %v116, 6
    %vm1383 = vcmp.gt.s32.totalorder %v117, 6
    %vm1384 = vcmp.gt.s32.totalorder %v118, 6
    %vm1385 = vcmp.gt.s32.totalorder %v119, 6
    %vm1386 = vcmp.gt.s32.totalorder %v120, 6
    %vm1387 = vcmp.gt.s32.totalorder %v121, 6
    %vm1388 = vcmp.gt.s32.totalorder %v122, 6
    %vm1389 = vcmp.gt.s32.totalorder %v123, 6
    %1390 = vset.pattern.permute.xlu0 6
    %1391 = vperm.xlu0 %1390, %v77
    %v1392 = vpop.permute.xlu0 %1391
    %1393 = vset.pattern.permute.xlu0 6
    %1394 = vperm.xlu0 %1393, %v79
    %v1395 = vpop.permute.xlu0 %1394
    %1396 = vset.pattern.permute.xlu0 6
    %1397 = vperm.xlu0 %1396, %v81
    %v1398 = vpop.permute.xlu0 %1397
    %1399 = vset.pattern.permute.xlu0 6
    %1400 = vperm.xlu0 %1399, %v83
    %v1401 = vpop.permute.xlu0 %1400
    %1402 = vset.pattern.permute.xlu0 6
    %1403 = vperm.xlu0 %1402, %v85
    %v1404 = vpop.permute.xlu0 %1403
    %1405 = vset.pattern.permute.xlu0 6
    %1406 = vperm.xlu0 %1405, %v87
    %v1407 = vpop.permute.xlu0 %1406
    %1408 = vset.pattern.permute.xlu0 6
    %1409 = vperm.xlu0 %1408, %v89
    %v1410 = vpop.permute.xlu0 %1409
    %1411 = vset.pattern.permute.xlu0 6
    %1412 = vperm.xlu0 %1411, %v91
    %v1413 = vpop.permute.xlu0 %1412
    %1414 = vset.pattern.permute.xlu0 6
    %1415 = vperm.xlu0 %1414, %v93
    %v1416 = vpop.permute.xlu0 %1415
    %1417 = vset.pattern.permute.xlu0 6
    %1418 = vperm.xlu0 %1417, %v95
    %v1419 = vpop.permute.xlu0 %1418
    %1420 = vset.pattern.permute.xlu0 6
    %1421 = vperm.xlu0 %1420, %v97
    %v1422 = vpop.permute.xlu0 %1421
    %1423 = vset.pattern.permute.xlu0 6
    %1424 = vperm.xlu0 %1423, %v99
    %v1425 = vpop.permute.xlu0 %1424
    %1426 = vset.pattern.permute.xlu0 6
    %1427 = vperm.xlu0 %1426, %v101
    %v1428 = vpop.permute.xlu0 %1427
    %1429 = vset.pattern.permute.xlu0 6
    %1430 = vperm.xlu0 %1429, %v103
    %v1431 = vpop.permute.xlu0 %1430
    %1432 = vset.pattern.permute.xlu0 6
    %1433 = vperm.xlu0 %1432, %v105
    %v1434 = vpop.permute.xlu0 %1433
    %1435 = vset.pattern.permute.xlu0 6
    %1436 = vperm.xlu0 %1435, %v107
    %v1437 = vpop.permute.xlu0 %1436
    %vm1438 = vcmp.eq.s32.totalorder %v125, %v1392
    %vm1439 = vcmp.eq.s32.totalorder %v125, %v1395
    %vm1440 = vcmp.eq.s32.totalorder %v125, %v1398
    %vm1441 = vcmp.eq.s32.totalorder %v125, %v1401
    %vm1442 = vcmp.eq.s32.totalorder %v125, %v1404
    %vm1443 = vcmp.eq.s32.totalorder %v125, %v1407
    %vm1444 = vcmp.eq.s32.totalorder %v125, %v1410
    %vm1445 = vcmp.eq.s32.totalorder %v125, %v1413
    %vm1446 = vcmp.eq.s32.totalorder %v125, %v1416
    %vm1447 = vcmp.eq.s32.totalorder %v125, %v1419
    %vm1448 = vcmp.eq.s32.totalorder %v125, %v1422
    %vm1449 = vcmp.eq.s32.totalorder %v125, %v1425
    %vm1450 = vcmp.eq.s32.totalorder %v125, %v1428
    %vm1451 = vcmp.eq.s32.totalorder %v125, %v1431
    %vm1452 = vcmp.eq.s32.totalorder %v125, %v1434
    %vm1453 = vcmp.eq.s32.totalorder %v125, %v1437
    %v1454 = vsel %vm1374, 1, 0
    %v1455 = vsel %vm1375, 1, 0
    %v1456 = vsel %vm1376, 1, 0
    %v1457 = vsel %vm1377, 1, 0
    %v1458 = vsel %vm1378, 1, 0
    %v1459 = vsel %vm1379, 1, 0
    %v1460 = vsel %vm1380, 1, 0
    %v1461 = vsel %vm1381, 1, 0
    %v1462 = vsel %vm1382, 1, 0
    %v1463 = vsel %vm1383, 1, 0
    %v1464 = vsel %vm1384, 1, 0
    %v1465 = vsel %vm1385, 1, 0
    %v1466 = vsel %vm1386, 1, 0
    %v1467 = vsel %vm1387, 1, 0
    %v1468 = vsel %vm1388, 1, 0
    %v1469 = vsel %vm1389, 1, 0
    %1470 = vset.pattern.permute.xlu0 0
    %1471 = vperm.xlu0 %1470, %v1454
    %v1472 = vpop.permute.xlu0 %1471
    %1473 = vset.pattern.permute.xlu0 0
    %1474 = vperm.xlu0 %1473, %v1455
    %v1475 = vpop.permute.xlu0 %1474
    %1476 = vset.pattern.permute.xlu0 0
    %1477 = vperm.xlu0 %1476, %v1456
    %v1478 = vpop.permute.xlu0 %1477
    %1479 = vset.pattern.permute.xlu0 0
    %1480 = vperm.xlu0 %1479, %v1457
    %v1481 = vpop.permute.xlu0 %1480
    %1482 = vset.pattern.permute.xlu0 0
    %1483 = vperm.xlu0 %1482, %v1458
    %v1484 = vpop.permute.xlu0 %1483
    %1485 = vset.pattern.permute.xlu0 0
    %1486 = vperm.xlu0 %1485, %v1459
    %v1487 = vpop.permute.xlu0 %1486
    %1488 = vset.pattern.permute.xlu0 0
    %1489 = vperm.xlu0 %1488, %v1460
    %v1490 = vpop.permute.xlu0 %1489
    %1491 = vset.pattern.permute.xlu0 0
    %1492 = vperm.xlu0 %1491, %v1461
    %v1493 = vpop.permute.xlu0 %1492
    %1494 = vset.pattern.permute.xlu0 0
    %1495 = vperm.xlu0 %1494, %v1462
    %v1496 = vpop.permute.xlu0 %1495
    %1497 = vset.pattern.permute.xlu0 0
    %1498 = vperm.xlu0 %1497, %v1463
    %v1499 = vpop.permute.xlu0 %1498
    %1500 = vset.pattern.permute.xlu0 0
    %1501 = vperm.xlu0 %1500, %v1464
    %v1502 = vpop.permute.xlu0 %1501
    %1503 = vset.pattern.permute.xlu0 0
    %1504 = vperm.xlu0 %1503, %v1465
    %v1505 = vpop.permute.xlu0 %1504
    %1506 = vset.pattern.permute.xlu0 0
    %1507 = vperm.xlu0 %1506, %v1466
    %v1508 = vpop.permute.xlu0 %1507
    %1509 = vset.pattern.permute.xlu0 0
    %1510 = vperm.xlu0 %1509, %v1467
    %v1511 = vpop.permute.xlu0 %1510
    %1512 = vset.pattern.permute.xlu0 0
    %1513 = vperm.xlu0 %1512, %v1468
    %v1514 = vpop.permute.xlu0 %1513
    %1515 = vset.pattern.permute.xlu0 0
    %1516 = vperm.xlu0 %1515, %v1469
    %v1517 = vpop.permute.xlu0 %1516
    %vm1518 = vcmp.eq.s32.totalorder %v1472, 1
    %vm1519 = vcmp.eq.s32.totalorder %v1475, 1
    %vm1520 = vcmp.eq.s32.totalorder %v1478, 1
    %vm1521 = vcmp.eq.s32.totalorder %v1481, 1
    %vm1522 = vcmp.eq.s32.totalorder %v1484, 1
    %vm1523 = vcmp.eq.s32.totalorder %v1487, 1
    %vm1524 = vcmp.eq.s32.totalorder %v1490, 1
    %vm1525 = vcmp.eq.s32.totalorder %v1493, 1
    %vm1526 = vcmp.eq.s32.totalorder %v1496, 1
    %vm1527 = vcmp.eq.s32.totalorder %v1499, 1
    %vm1528 = vcmp.eq.s32.totalorder %v1502, 1
    %vm1529 = vcmp.eq.s32.totalorder %v1505, 1
    %vm1530 = vcmp.eq.s32.totalorder %v1508, 1
    %vm1531 = vcmp.eq.s32.totalorder %v1511, 1
    %vm1532 = vcmp.eq.s32.totalorder %v1514, 1
    %vm1533 = vcmp.eq.s32.totalorder %v1517, 1
    %vm1534 = vmand %vm1438, %vm1518
    %vm1535 = vmand %vm1439, %vm1519
    %vm1536 = vmand %vm1440, %vm1520
    %vm1537 = vmand %vm1441, %vm1521
    %vm1538 = vmand %vm1442, %vm1522
    %vm1539 = vmand %vm1443, %vm1523
    %vm1540 = vmand %vm1444, %vm1524
    %vm1541 = vmand %vm1445, %vm1525
    %vm1542 = vmand %vm1446, %vm1526
    %vm1543 = vmand %vm1447, %vm1527
    %vm1544 = vmand %vm1448, %vm1528
    %vm1545 = vmand %vm1449, %vm1529
    %vm1546 = vmand %vm1450, %vm1530
    %vm1547 = vmand %vm1451, %vm1531
    %vm1548 = vmand %vm1452, %vm1532
    %vm1549 = vmand %vm1453, %vm1533
    %v1550 = vsel %vm1534, 1.0, 0.0
    %v1551 = vsel %vm1535, 1.0, 0.0
    %v1552 = vsel %vm1536, 1.0, 0.0
    %v1553 = vsel %vm1537, 1.0, 0.0
    %v1554 = vsel %vm1538, 1.0, 0.0
    %v1555 = vsel %vm1539, 1.0, 0.0
    %v1556 = vsel %vm1540, 1.0, 0.0
    %v1557 = vsel %vm1541, 1.0, 0.0
    %v1558 = vsel %vm1542, 1.0, 0.0
    %v1559 = vsel %vm1543, 1.0, 0.0
    %v1560 = vsel %vm1544, 1.0, 0.0
    %v1561 = vsel %vm1545, 1.0, 0.0
    %v1562 = vsel %vm1546, 1.0, 0.0
    %v1563 = vsel %vm1547, 1.0, 0.0
    %v1564 = vsel %vm1548, 1.0, 0.0
    %v1565 = vsel %vm1549, 1.0, 0.0
    %v1566 = vadd.f32 %v1358, %v1550
    %v1567 = vadd.f32 %v1359, %v1551
    %v1568 = vadd.f32 %v1360, %v1552
    %v1569 = vadd.f32 %v1361, %v1553
    %v1570 = vadd.f32 %v1362, %v1554
    %v1571 = vadd.f32 %v1363, %v1555
    %v1572 = vadd.f32 %v1364, %v1556
    %v1573 = vadd.f32 %v1365, %v1557
    %v1574 = vadd.f32 %v1366, %v1558
    %v1575 = vadd.f32 %v1367, %v1559
    %v1576 = vadd.f32 %v1368, %v1560
    %v1577 = vadd.f32 %v1369, %v1561
    %v1578 = vadd.f32 %v1370, %v1562
    %v1579 = vadd.f32 %v1371, %v1563
    %v1580 = vadd.f32 %v1372, %v1564
    %v1581 = vadd.f32 %v1373, %v1565
    %vm1582 = vcmp.gt.s32.totalorder %v108, 7
    %vm1583 = vcmp.gt.s32.totalorder %v109, 7
    %vm1584 = vcmp.gt.s32.totalorder %v110, 7
    %vm1585 = vcmp.gt.s32.totalorder %v111, 7
    %vm1586 = vcmp.gt.s32.totalorder %v112, 7
    %vm1587 = vcmp.gt.s32.totalorder %v113, 7
    %vm1588 = vcmp.gt.s32.totalorder %v114, 7
    %vm1589 = vcmp.gt.s32.totalorder %v115, 7
    %vm1590 = vcmp.gt.s32.totalorder %v116, 7
    %vm1591 = vcmp.gt.s32.totalorder %v117, 7
    %vm1592 = vcmp.gt.s32.totalorder %v118, 7
    %vm1593 = vcmp.gt.s32.totalorder %v119, 7
    %vm1594 = vcmp.gt.s32.totalorder %v120, 7
    %vm1595 = vcmp.gt.s32.totalorder %v121, 7
    %vm1596 = vcmp.gt.s32.totalorder %v122, 7
    %vm1597 = vcmp.gt.s32.totalorder %v123, 7
    %1598 = vset.pattern.permute.xlu0 7
    %1599 = vperm.xlu0 %1598, %v77
    %v1600 = vpop.permute.xlu0 %1599
    %1601 = vset.pattern.permute.xlu0 7
    %1602 = vperm.xlu0 %1601, %v79
    %v1603 = vpop.permute.xlu0 %1602
    %1604 = vset.pattern.permute.xlu0 7
    %1605 = vperm.xlu0 %1604, %v81
    %v1606 = vpop.permute.xlu0 %1605
    %1607 = vset.pattern.permute.xlu0 7
    %1608 = vperm.xlu0 %1607, %v83
    %v1609 = vpop.permute.xlu0 %1608
    %1610 = vset.pattern.permute.xlu0 7
    %1611 = vperm.xlu0 %1610, %v85
    %v1612 = vpop.permute.xlu0 %1611
    %1613 = vset.pattern.permute.xlu0 7
    %1614 = vperm.xlu0 %1613, %v87
    %v1615 = vpop.permute.xlu0 %1614
    %1616 = vset.pattern.permute.xlu0 7
    %1617 = vperm.xlu0 %1616, %v89
    %v1618 = vpop.permute.xlu0 %1617
    %1619 = vset.pattern.permute.xlu0 7
    %1620 = vperm.xlu0 %1619, %v91
    %v1621 = vpop.permute.xlu0 %1620
    %1622 = vset.pattern.permute.xlu0 7
    %1623 = vperm.xlu0 %1622, %v93
    %v1624 = vpop.permute.xlu0 %1623
    %1625 = vset.pattern.permute.xlu0 7
    %1626 = vperm.xlu0 %1625, %v95
    %v1627 = vpop.permute.xlu0 %1626
    %1628 = vset.pattern.permute.xlu0 7
    %1629 = vperm.xlu0 %1628, %v97
    %v1630 = vpop.permute.xlu0 %1629
    %1631 = vset.pattern.permute.xlu0 7
    %1632 = vperm.xlu0 %1631, %v99
    %v1633 = vpop.permute.xlu0 %1632
    %1634 = vset.pattern.permute.xlu0 7
    %1635 = vperm.xlu0 %1634, %v101
    %v1636 = vpop.permute.xlu0 %1635
    %1637 = vset.pattern.permute.xlu0 7
    %1638 = vperm.xlu0 %1637, %v103
    %v1639 = vpop.permute.xlu0 %1638
    %1640 = vset.pattern.permute.xlu0 7
    %1641 = vperm.xlu0 %1640, %v105
    %v1642 = vpop.permute.xlu0 %1641
    %1643 = vset.pattern.permute.xlu0 7
    %1644 = vperm.xlu0 %1643, %v107
    %v1645 = vpop.permute.xlu0 %1644
    %vm1646 = vcmp.eq.s32.totalorder %v125, %v1600
    %vm1647 = vcmp.eq.s32.totalorder %v125, %v1603
    %vm1648 = vcmp.eq.s32.totalorder %v125, %v1606
    %vm1649 = vcmp.eq.s32.totalorder %v125, %v1609
    %vm1650 = vcmp.eq.s32.totalorder %v125, %v1612
    %vm1651 = vcmp.eq.s32.totalorder %v125, %v1615
    %vm1652 = vcmp.eq.s32.totalorder %v125, %v1618
    %vm1653 = vcmp.eq.s32.totalorder %v125, %v1621
    %vm1654 = vcmp.eq.s32.totalorder %v125, %v1624
    %vm1655 = vcmp.eq.s32.totalorder %v125, %v1627
    %vm1656 = vcmp.eq.s32.totalorder %v125, %v1630
    %vm1657 = vcmp.eq.s32.totalorder %v125, %v1633
    %vm1658 = vcmp.eq.s32.totalorder %v125, %v1636
    %vm1659 = vcmp.eq.s32.totalorder %v125, %v1639
    %vm1660 = vcmp.eq.s32.totalorder %v125, %v1642
    %vm1661 = vcmp.eq.s32.totalorder %v125, %v1645
    %v1662 = vsel %vm1582, 1, 0
    %v1663 = vsel %vm1583, 1, 0
    %v1664 = vsel %vm1584, 1, 0
    %v1665 = vsel %vm1585, 1, 0
    %v1666 = vsel %vm1586, 1, 0
    %v1667 = vsel %vm1587, 1, 0
    %v1668 = vsel %vm1588, 1, 0
    %v1669 = vsel %vm1589, 1, 0
    %v1670 = vsel %vm1590, 1, 0
    %v1671 = vsel %vm1591, 1, 0
    %v1672 = vsel %vm1592, 1, 0
    %v1673 = vsel %vm1593, 1, 0
    %v1674 = vsel %vm1594, 1, 0
    %v1675 = vsel %vm1595, 1, 0
    %v1676 = vsel %vm1596, 1, 0
    %v1677 = vsel %vm1597, 1, 0
    %1678 = vset.pattern.permute.xlu0 0
    %1679 = vperm.xlu0 %1678, %v1662
    %v1680 = vpop.permute.xlu0 %1679
    %1681 = vset.pattern.permute.xlu0 0
    %1682 = vperm.xlu0 %1681, %v1663
    %v1683 = vpop.permute.xlu0 %1682
    %1684 = vset.pattern.permute.xlu0 0
    %1685 = vperm.xlu0 %1684, %v1664
    %v1686 = vpop.permute.xlu0 %1685
    %1687 = vset.pattern.permute.xlu0 0
    %1688 = vperm.xlu0 %1687, %v1665
    %v1689 = vpop.permute.xlu0 %1688
    %1690 = vset.pattern.permute.xlu0 0
    %1691 = vperm.xlu0 %1690, %v1666
    %v1692 = vpop.permute.xlu0 %1691
    %1693 = vset.pattern.permute.xlu0 0
    %1694 = vperm.xlu0 %1693, %v1667
    %v1695 = vpop.permute.xlu0 %1694
    %1696 = vset.pattern.permute.xlu0 0
    %1697 = vperm.xlu0 %1696, %v1668
    %v1698 = vpop.permute.xlu0 %1697
    %1699 = vset.pattern.permute.xlu0 0
    %1700 = vperm.xlu0 %1699, %v1669
    %v1701 = vpop.permute.xlu0 %1700
    %1702 = vset.pattern.permute.xlu0 0
    %1703 = vperm.xlu0 %1702, %v1670
    %v1704 = vpop.permute.xlu0 %1703
    %1705 = vset.pattern.permute.xlu0 0
    %1706 = vperm.xlu0 %1705, %v1671
    %v1707 = vpop.permute.xlu0 %1706
    %1708 = vset.pattern.permute.xlu0 0
    %1709 = vperm.xlu0 %1708, %v1672
    %v1710 = vpop.permute.xlu0 %1709
    %1711 = vset.pattern.permute.xlu0 0
    %1712 = vperm.xlu0 %1711, %v1673
    %v1713 = vpop.permute.xlu0 %1712
    %1714 = vset.pattern.permute.xlu0 0
    %1715 = vperm.xlu0 %1714, %v1674
    %v1716 = vpop.permute.xlu0 %1715
    %1717 = vset.pattern.permute.xlu0 0
    %1718 = vperm.xlu0 %1717, %v1675
    %v1719 = vpop.permute.xlu0 %1718
    %1720 = vset.pattern.permute.xlu0 0
    %1721 = vperm.xlu0 %1720, %v1676
    %v1722 = vpop.permute.xlu0 %1721
    %1723 = vset.pattern.permute.xlu0 0
    %1724 = vperm.xlu0 %1723, %v1677
    %v1725 = vpop.permute.xlu0 %1724
    %vm1726 = vcmp.eq.s32.totalorder %v1680, 1
    %vm1727 = vcmp.eq.s32.totalorder %v1683, 1
    %vm1728 = vcmp.eq.s32.totalorder %v1686, 1
    %vm1729 = vcmp.eq.s32.totalorder %v1689, 1
    %vm1730 = vcmp.eq.s32.totalorder %v1692, 1
    %vm1731 = vcmp.eq.s32.totalorder %v1695, 1
    %vm1732 = vcmp.eq.s32.totalorder %v1698, 1
    %vm1733 = vcmp.eq.s32.totalorder %v1701, 1
    %vm1734 = vcmp.eq.s32.totalorder %v1704, 1
    %vm1735 = vcmp.eq.s32.totalorder %v1707, 1
    %vm1736 = vcmp.eq.s32.totalorder %v1710, 1
    %vm1737 = vcmp.eq.s32.totalorder %v1713, 1
    %vm1738 = vcmp.eq.s32.totalorder %v1716, 1
    %vm1739 = vcmp.eq.s32.totalorder %v1719, 1
    %vm1740 = vcmp.eq.s32.totalorder %v1722, 1
    %vm1741 = vcmp.eq.s32.totalorder %v1725, 1
    %vm1742 = vmand %vm1646, %vm1726
    %vm1743 = vmand %vm1647, %vm1727
    %vm1744 = vmand %vm1648, %vm1728
    %vm1745 = vmand %vm1649, %vm1729
    %vm1746 = vmand %vm1650, %vm1730
    %vm1747 = vmand %vm1651, %vm1731
    %vm1748 = vmand %vm1652, %vm1732
    %vm1749 = vmand %vm1653, %vm1733
    %vm1750 = vmand %vm1654, %vm1734
    %vm1751 = vmand %vm1655, %vm1735
    %vm1752 = vmand %vm1656, %vm1736
    %vm1753 = vmand %vm1657, %vm1737
    %vm1754 = vmand %vm1658, %vm1738
    %vm1755 = vmand %vm1659, %vm1739
    %vm1756 = vmand %vm1660, %vm1740
    %vm1757 = vmand %vm1661, %vm1741
    %v1758 = vsel %vm1742, 1.0, 0.0
    %v1759 = vsel %vm1743, 1.0, 0.0
    %v1760 = vsel %vm1744, 1.0, 0.0
    %v1761 = vsel %vm1745, 1.0, 0.0
    %v1762 = vsel %vm1746, 1.0, 0.0
    %v1763 = vsel %vm1747, 1.0, 0.0
    %v1764 = vsel %vm1748, 1.0, 0.0
    %v1765 = vsel %vm1749, 1.0, 0.0
    %v1766 = vsel %vm1750, 1.0, 0.0
    %v1767 = vsel %vm1751, 1.0, 0.0
    %v1768 = vsel %vm1752, 1.0, 0.0
    %v1769 = vsel %vm1753, 1.0, 0.0
    %v1770 = vsel %vm1754, 1.0, 0.0
    %v1771 = vsel %vm1755, 1.0, 0.0
    %v1772 = vsel %vm1756, 1.0, 0.0
    %v1773 = vsel %vm1757, 1.0, 0.0
    %v1774 = vadd.f32 %v1566, %v1758
    %v1775 = vadd.f32 %v1567, %v1759
    %v1776 = vadd.f32 %v1568, %v1760
    %v1777 = vadd.f32 %v1569, %v1761
    %v1778 = vadd.f32 %v1570, %v1762
    %v1779 = vadd.f32 %v1571, %v1763
    %v1780 = vadd.f32 %v1572, %v1764
    %v1781 = vadd.f32 %v1573, %v1765
    %v1782 = vadd.f32 %v1574, %v1766
    %v1783 = vadd.f32 %v1575, %v1767
    %v1784 = vadd.f32 %v1576, %v1768
    %v1785 = vadd.f32 %v1577, %v1769
    %v1786 = vadd.f32 %v1578, %v1770
    %v1787 = vadd.f32 %v1579, %v1771
    %v1788 = vadd.f32 %v1580, %v1772
    %v1789 = vadd.f32 %v1581, %v1773
    %v1790 = vpack.c.bf16 %v1775, %v1774
    %v1791 = vpack.c.bf16 %v1777, %v1776
    %v1792 = vpack.c.bf16 %v1779, %v1778
    %v1793 = vpack.c.bf16 %v1781, %v1780
    %v1794 = vpack.c.bf16 %v1783, %v1782
    %v1795 = vpack.c.bf16 %v1785, %v1784
    %v1796 = vpack.c.bf16 %v1787, %v1786
    %v1797 = vpack.c.bf16 %v1789, %v1788
    %v1798 = vld [vmem:[%s2] sm:$0xf]
    %v1799 = vld [vmem:[%s2 + $0x4] sm:$0xf]
    %v1800 = vld [vmem:[%s2 + $0x8] sm:$0xf]
    %v1801 = vld [vmem:[%s2 + $0xc] sm:$0xf]
    %v1802 = vld [vmem:[%s2 + $0x10] sm:$0xf]
    %v1803 = vld [vmem:[%s2 + $0x14] sm:$0xf]
    %v1804 = vld [vmem:[%s2 + $0x18] sm:$0xf]
    %v1805 = vld [vmem:[%s2 + $0x1c] sm:$0xf]
    %v1814 = vunpack.c.l.b16 %v1798
    %v1815 = vunpack.c.l.b16 %v1799
    %v1816 = vunpack.c.l.b16 %v1800
    %v1817 = vunpack.c.l.b16 %v1801
    %v1818 = vunpack.c.l.b16 %v1802
    %v1819 = vunpack.c.l.b16 %v1803
    %v1820 = vunpack.c.l.b16 %v1804
    %v1821 = vunpack.c.l.b16 %v1805
    %v1822 = vpack.c.b16 %v1815, %v1814
    %v1823 = vpack.c.b16 %v1817, %v1816
    %v1824 = vpack.c.b16 %v1819, %v1818
    %v1825 = vpack.c.b16 %v1821, %v1820
    %vm1830 = vcmask 523264
    %v1832 = vsel %vm1830, %v1790, 0
    %v1835 = vsel %vm1830, %v1791, 0
    %v1838 = vsel %vm1830, %v1792, 0
    %v1841 = vsel %vm1830, %v1793, 0
    %v1844 = vsel %vm1830, %v1794, 0
    %v1847 = vsel %vm1830, %v1795, 0
    %v1850 = vsel %vm1830, %v1796, 0
    %v1853 = vsel %vm1830, %v1797, 0
    %1855 = vmatpush.bf16.msra.mxu0 0
    %1856 = vmatpush.bf16.msra.mxu0 0
    %1857 = vmatpush.bf16.msra.mxu0 0
    %1858 = vmatpush.bf16.msra.mxu0 0
    %1859 = vmatpush.bf16.msra.mxu0 %v1825
    %1860 = vmatpush.bf16.msra.mxu0 %v1824
    %1861 = vmatpush.bf16.msra.mxu0 %v1823
    %1862 = vmatpush.bf16.msra.mxu0 %v1822
    %1863 = vmatmul.bf16.gmra.mxu0 %v1832
    %v1864 = vpop.f32.mrf.mxu0
    %v1865 = vadd.f32 0.0, %v1864
    %v1866 = vpop.f32.mrf.mxu0
    %v1867 = vadd.f32 0.0, %v1866
    %1868 = vmatmul.bf16.gmra.mxu0 %v1835
    %v1869 = vpop.f32.mrf.mxu0
    %v1870 = vadd.f32 0.0, %v1869
    %v1871 = vpop.f32.mrf.mxu0
    %v1872 = vadd.f32 0.0, %v1871
    %1873 = vmatmul.bf16.gmra.mxu0 %v1838
    %v1874 = vpop.f32.mrf.mxu0
    %v1875 = vadd.f32 0.0, %v1874
    %v1876 = vpop.f32.mrf.mxu0
    %v1877 = vadd.f32 0.0, %v1876
    %1878 = vmatmul.bf16.gmra.mxu0 %v1841
    %v1879 = vpop.f32.mrf.mxu0
    %v1880 = vadd.f32 0.0, %v1879
    %v1881 = vpop.f32.mrf.mxu0
    %v1882 = vadd.f32 0.0, %v1881
    %1883 = vmatmul.bf16.gmra.mxu0 %v1844
    %v1884 = vpop.f32.mrf.mxu0
    %v1885 = vadd.f32 0.0, %v1884
    %v1886 = vpop.f32.mrf.mxu0
    %v1887 = vadd.f32 0.0, %v1886
    %1888 = vmatmul.bf16.gmra.mxu0 %v1847
    %v1889 = vpop.f32.mrf.mxu0
    %v1890 = vadd.f32 0.0, %v1889
    %v1891 = vpop.f32.mrf.mxu0
    %v1892 = vadd.f32 0.0, %v1891
    %1893 = vmatmul.bf16.gmra.mxu0 %v1850
    %v1894 = vpop.f32.mrf.mxu0
    %v1895 = vadd.f32 0.0, %v1894
    %v1896 = vpop.f32.mrf.mxu0
    %v1897 = vadd.f32 0.0, %v1896
    %1898 = vmatmul.bf16.gmra.mxu0 %v1853
    %v1899 = vpop.f32.mrf.mxu0
    %v1900 = vadd.f32 0.0, %v1899
    %v1901 = vpop.f32.mrf.mxu0
    %v1902 = vadd.f32 0.0, %v1901
    %1903 = vdwg.mxu0
    %vm1904 = vcmp.gt.s32.totalorder %v108, 1
    %v1905 = vsel %vm1904, %v108, 1
    %vm1906 = vcmp.gt.s32.totalorder %v109, 1
    %v1907 = vsel %vm1906, %v109, 1
    %vm1908 = vcmp.gt.s32.totalorder %v110, 1
    %v1909 = vsel %vm1908, %v110, 1
    %vm1910 = vcmp.gt.s32.totalorder %v111, 1
    %v1911 = vsel %vm1910, %v111, 1
    %vm1912 = vcmp.gt.s32.totalorder %v112, 1
    %v1913 = vsel %vm1912, %v112, 1
    %vm1914 = vcmp.gt.s32.totalorder %v113, 1
    %v1915 = vsel %vm1914, %v113, 1
    %vm1916 = vcmp.gt.s32.totalorder %v114, 1
    %v1917 = vsel %vm1916, %v114, 1
    %vm1918 = vcmp.gt.s32.totalorder %v115, 1
    %v1919 = vsel %vm1918, %v115, 1
    %vm1920 = vcmp.gt.s32.totalorder %v116, 1
    %v1921 = vsel %vm1920, %v116, 1
    %vm1922 = vcmp.gt.s32.totalorder %v117, 1
    %v1923 = vsel %vm1922, %v117, 1
    %vm1924 = vcmp.gt.s32.totalorder %v118, 1
    %v1925 = vsel %vm1924, %v118, 1
    %vm1926 = vcmp.gt.s32.totalorder %v119, 1
    %v1927 = vsel %vm1926, %v119, 1
    %vm1928 = vcmp.gt.s32.totalorder %v120, 1
    %v1929 = vsel %vm1928, %v120, 1
    %vm1930 = vcmp.gt.s32.totalorder %v121, 1
    %v1931 = vsel %vm1930, %v121, 1
    %vm1932 = vcmp.gt.s32.totalorder %v122, 1
    %v1933 = vsel %vm1932, %v122, 1
    %vm1934 = vcmp.gt.s32.totalorder %v123, 1
    %v1935 = vsel %vm1934, %v123, 1
    %v1936 = vcvt.s32.f32 %v1905
    %v1937 = vcvt.s32.f32 %v1907
    %v1938 = vcvt.s32.f32 %v1909
    %v1939 = vcvt.s32.f32 %v1911
    %v1940 = vcvt.s32.f32 %v1913
    %v1941 = vcvt.s32.f32 %v1915
    %v1942 = vcvt.s32.f32 %v1917
    %v1943 = vcvt.s32.f32 %v1919
    %v1944 = vcvt.s32.f32 %v1921
    %v1945 = vcvt.s32.f32 %v1923
    %v1946 = vcvt.s32.f32 %v1925
    %v1947 = vcvt.s32.f32 %v1927
    %v1948 = vcvt.s32.f32 %v1929
    %v1949 = vcvt.s32.f32 %v1931
    %v1950 = vcvt.s32.f32 %v1933
    %v1951 = vcvt.s32.f32 %v1935
    %v1952 = vrcp.pop %v1936
    %v1953 = vmul.f32 %v1936, %v1952
    %v1954 = vsub.f32 1.0, %v1953
    %v1955 = vmul.f32 %v1952, %v1954
    %v1956 = vadd.f32 %v1952, %v1955
    %vm1957 = vweird.f32 %v1936
    %vm1958 = vweird.f32 %v1952
    %vm1959 = vmor %vm1957, %vm1958
    %v1960 = vsel %vm1959, %v1952, %v1956
    %v1961 = vand.u32 2147483647, %v1936
    %vm1962 = vcmp.eq.f32.partialorder %v1961, 8.507059e+37
    %v1963 = vand.u32 %v1936, 2147483648
    %v1964 = vor.u32 1.1754944e-38, %v1963
    %v1965 = vsel %vm1962, %v1964, %v1960
    %v1966 = vmul.f32 1.0, %v1965
    %v1967 = vrcp.pop %v1937
    %v1968 = vmul.f32 %v1937, %v1967
    %v1969 = vsub.f32 1.0, %v1968
    %v1970 = vmul.f32 %v1967, %v1969
    %v1971 = vadd.f32 %v1967, %v1970
    %vm1972 = vweird.f32 %v1937
    %vm1973 = vweird.f32 %v1967
    %vm1974 = vmor %vm1972, %vm1973
    %v1975 = vsel %vm1974, %v1967, %v1971
    %v1976 = vand.u32 2147483647, %v1937
    %vm1977 = vcmp.eq.f32.partialorder %v1976, 8.507059e+37
    %v1978 = vand.u32 %v1937, 2147483648
    %v1979 = vor.u32 1.1754944e-38, %v1978
    %v1980 = vsel %vm1977, %v1979, %v1975
    %v1981 = vmul.f32 1.0, %v1980
    %v1982 = vrcp.pop %v1938
    %v1983 = vmul.f32 %v1938, %v1982
    %v1984 = vsub.f32 1.0, %v1983
    %v1985 = vmul.f32 %v1982, %v1984
    %v1986 = vadd.f32 %v1982, %v1985
    %vm1987 = vweird.f32 %v1938
    %vm1988 = vweird.f32 %v1982
    %vm1989 = vmor %vm1987, %vm1988
    %v1990 = vsel %vm1989, %v1982, %v1986
    %v1991 = vand.u32 2147483647, %v1938
    %vm1992 = vcmp.eq.f32.partialorder %v1991, 8.507059e+37
    %v1993 = vand.u32 %v1938, 2147483648
    %v1994 = vor.u32 1.1754944e-38, %v1993
    %v1995 = vsel %vm1992, %v1994, %v1990
    %v1996 = vmul.f32 1.0, %v1995
    %v1997 = vrcp.pop %v1939
    %v1998 = vmul.f32 %v1939, %v1997
    %v1999 = vsub.f32 1.0, %v1998
    %v2000 = vmul.f32 %v1997, %v1999
    %v2001 = vadd.f32 %v1997, %v2000
    %vm2002 = vweird.f32 %v1939
    %vm2003 = vweird.f32 %v1997
    %vm2004 = vmor %vm2002, %vm2003
    %v2005 = vsel %vm2004, %v1997, %v2001
    %v2006 = vand.u32 2147483647, %v1939
    %vm2007 = vcmp.eq.f32.partialorder %v2006, 8.507059e+37
    %v2008 = vand.u32 %v1939, 2147483648
    %v2009 = vor.u32 1.1754944e-38, %v2008
    %v2010 = vsel %vm2007, %v2009, %v2005
    %v2011 = vmul.f32 1.0, %v2010
    %v2012 = vrcp.pop %v1940
    %v2013 = vmul.f32 %v1940, %v2012
    %v2014 = vsub.f32 1.0, %v2013
    %v2015 = vmul.f32 %v2012, %v2014
    %v2016 = vadd.f32 %v2012, %v2015
    %vm2017 = vweird.f32 %v1940
    %vm2018 = vweird.f32 %v2012
    %vm2019 = vmor %vm2017, %vm2018
    %v2020 = vsel %vm2019, %v2012, %v2016
    %v2021 = vand.u32 2147483647, %v1940
    %vm2022 = vcmp.eq.f32.partialorder %v2021, 8.507059e+37
    %v2023 = vand.u32 %v1940, 2147483648
    %v2024 = vor.u32 1.1754944e-38, %v2023
    %v2025 = vsel %vm2022, %v2024, %v2020
    %v2026 = vmul.f32 1.0, %v2025
    %v2027 = vrcp.pop %v1941
    %v2028 = vmul.f32 %v1941, %v2027
    %v2029 = vsub.f32 1.0, %v2028
    %v2030 = vmul.f32 %v2027, %v2029
    %v2031 = vadd.f32 %v2027, %v2030
    %vm2032 = vweird.f32 %v1941
    %vm2033 = vweird.f32 %v2027
    %vm2034 = vmor %vm2032, %vm2033
    %v2035 = vsel %vm2034, %v2027, %v2031
    %v2036 = vand.u32 2147483647, %v1941
    %vm2037 = vcmp.eq.f32.partialorder %v2036, 8.507059e+37
    %v2038 = vand.u32 %v1941, 2147483648
    %v2039 = vor.u32 1.1754944e-38, %v2038
    %v2040 = vsel %vm2037, %v2039, %v2035
    %v2041 = vmul.f32 1.0, %v2040
    %v2042 = vrcp.pop %v1942
    %v2043 = vmul.f32 %v1942, %v2042
    %v2044 = vsub.f32 1.0, %v2043
    %v2045 = vmul.f32 %v2042, %v2044
    %v2046 = vadd.f32 %v2042, %v2045
    %vm2047 = vweird.f32 %v1942
    %vm2048 = vweird.f32 %v2042
    %vm2049 = vmor %vm2047, %vm2048
    %v2050 = vsel %vm2049, %v2042, %v2046
    %v2051 = vand.u32 2147483647, %v1942
    %vm2052 = vcmp.eq.f32.partialorder %v2051, 8.507059e+37
    %v2053 = vand.u32 %v1942, 2147483648
    %v2054 = vor.u32 1.1754944e-38, %v2053
    %v2055 = vsel %vm2052, %v2054, %v2050
    %v2056 = vmul.f32 1.0, %v2055
    %v2057 = vrcp.pop %v1943
    %v2058 = vmul.f32 %v1943, %v2057
    %v2059 = vsub.f32 1.0, %v2058
    %v2060 = vmul.f32 %v2057, %v2059
    %v2061 = vadd.f32 %v2057, %v2060
    %vm2062 = vweird.f32 %v1943
    %vm2063 = vweird.f32 %v2057
    %vm2064 = vmor %vm2062, %vm2063
    %v2065 = vsel %vm2064, %v2057, %v2061
    %v2066 = vand.u32 2147483647, %v1943
    %vm2067 = vcmp.eq.f32.partialorder %v2066, 8.507059e+37
    %v2068 = vand.u32 %v1943, 2147483648
    %v2069 = vor.u32 1.1754944e-38, %v2068
    %v2070 = vsel %vm2067, %v2069, %v2065
    %v2071 = vmul.f32 1.0, %v2070
    %v2072 = vrcp.pop %v1944
    %v2073 = vmul.f32 %v1944, %v2072
    %v2074 = vsub.f32 1.0, %v2073
    %v2075 = vmul.f32 %v2072, %v2074
    %v2076 = vadd.f32 %v2072, %v2075
    %vm2077 = vweird.f32 %v1944
    %vm2078 = vweird.f32 %v2072
    %vm2079 = vmor %vm2077, %vm2078
    %v2080 = vsel %vm2079, %v2072, %v2076
    %v2081 = vand.u32 2147483647, %v1944
    %vm2082 = vcmp.eq.f32.partialorder %v2081, 8.507059e+37
    %v2083 = vand.u32 %v1944, 2147483648
    %v2084 = vor.u32 1.1754944e-38, %v2083
    %v2085 = vsel %vm2082, %v2084, %v2080
    %v2086 = vmul.f32 1.0, %v2085
    %v2087 = vrcp.pop %v1945
    %v2088 = vmul.f32 %v1945, %v2087
    %v2089 = vsub.f32 1.0, %v2088
    %v2090 = vmul.f32 %v2087, %v2089
    %v2091 = vadd.f32 %v2087, %v2090
    %vm2092 = vweird.f32 %v1945
    %vm2093 = vweird.f32 %v2087
    %vm2094 = vmor %vm2092, %vm2093
    %v2095 = vsel %vm2094, %v2087, %v2091
    %v2096 = vand.u32 2147483647, %v1945
    %vm2097 = vcmp.eq.f32.partialorder %v2096, 8.507059e+37
    %v2098 = vand.u32 %v1945, 2147483648
    %v2099 = vor.u32 1.1754944e-38, %v2098
    %v2100 = vsel %vm2097, %v2099, %v2095
    %v2101 = vmul.f32 1.0, %v2100
    %v2102 = vrcp.pop %v1946
    %v2103 = vmul.f32 %v1946, %v2102
    %v2104 = vsub.f32 1.0, %v2103
    %v2105 = vmul.f32 %v2102, %v2104
    %v2106 = vadd.f32 %v2102, %v2105
    %vm2107 = vweird.f32 %v1946
    %vm2108 = vweird.f32 %v2102
    %vm2109 = vmor %vm2107, %vm2108
    %v2110 = vsel %vm2109, %v2102, %v2106
    %v2111 = vand.u32 2147483647, %v1946
    %vm2112 = vcmp.eq.f32.partialorder %v2111, 8.507059e+37
    %v2113 = vand.u32 %v1946, 2147483648
    %v2114 = vor.u32 1.1754944e-38, %v2113
    %v2115 = vsel %vm2112, %v2114, %v2110
    %v2116 = vmul.f32 1.0, %v2115
    %v2117 = vrcp.pop %v1947
    %v2118 = vmul.f32 %v1947, %v2117
    %v2119 = vsub.f32 1.0, %v2118
    %v2120 = vmul.f32 %v2117, %v2119
    %v2121 = vadd.f32 %v2117, %v2120
    %vm2122 = vweird.f32 %v1947
    %vm2123 = vweird.f32 %v2117
    %vm2124 = vmor %vm2122, %vm2123
    %v2125 = vsel %vm2124, %v2117, %v2121
    %v2126 = vand.u32 2147483647, %v1947
    %vm2127 = vcmp.eq.f32.partialorder %v2126, 8.507059e+37
    %v2128 = vand.u32 %v1947, 2147483648
    %v2129 = vor.u32 1.1754944e-38, %v2128
    %v2130 = vsel %vm2127, %v2129, %v2125
    %v2131 = vmul.f32 1.0, %v2130
    %v2132 = vrcp.pop %v1948
    %v2133 = vmul.f32 %v1948, %v2132
    %v2134 = vsub.f32 1.0, %v2133
    %v2135 = vmul.f32 %v2132, %v2134
    %v2136 = vadd.f32 %v2132, %v2135
    %vm2137 = vweird.f32 %v1948
    %vm2138 = vweird.f32 %v2132
    %vm2139 = vmor %vm2137, %vm2138
    %v2140 = vsel %vm2139, %v2132, %v2136
    %v2141 = vand.u32 2147483647, %v1948
    %vm2142 = vcmp.eq.f32.partialorder %v2141, 8.507059e+37
    %v2143 = vand.u32 %v1948, 2147483648
    %v2144 = vor.u32 1.1754944e-38, %v2143
    %v2145 = vsel %vm2142, %v2144, %v2140
    %v2146 = vmul.f32 1.0, %v2145
    %v2147 = vrcp.pop %v1949
    %v2148 = vmul.f32 %v1949, %v2147
    %v2149 = vsub.f32 1.0, %v2148
    %v2150 = vmul.f32 %v2147, %v2149
    %v2151 = vadd.f32 %v2147, %v2150
    %vm2152 = vweird.f32 %v1949
    %vm2153 = vweird.f32 %v2147
    %vm2154 = vmor %vm2152, %vm2153
    %v2155 = vsel %vm2154, %v2147, %v2151
    %v2156 = vand.u32 2147483647, %v1949
    %vm2157 = vcmp.eq.f32.partialorder %v2156, 8.507059e+37
    %v2158 = vand.u32 %v1949, 2147483648
    %v2159 = vor.u32 1.1754944e-38, %v2158
    %v2160 = vsel %vm2157, %v2159, %v2155
    %v2161 = vmul.f32 1.0, %v2160
    %v2162 = vrcp.pop %v1950
    %v2163 = vmul.f32 %v1950, %v2162
    %v2164 = vsub.f32 1.0, %v2163
    %v2165 = vmul.f32 %v2162, %v2164
    %v2166 = vadd.f32 %v2162, %v2165
    %vm2167 = vweird.f32 %v1950
    %vm2168 = vweird.f32 %v2162
    %vm2169 = vmor %vm2167, %vm2168
    %v2170 = vsel %vm2169, %v2162, %v2166
    %v2171 = vand.u32 2147483647, %v1950
    %vm2172 = vcmp.eq.f32.partialorder %v2171, 8.507059e+37
    %v2173 = vand.u32 %v1950, 2147483648
    %v2174 = vor.u32 1.1754944e-38, %v2173
    %v2175 = vsel %vm2172, %v2174, %v2170
    %v2176 = vmul.f32 1.0, %v2175
    %v2177 = vrcp.pop %v1951
    %v2178 = vmul.f32 %v1951, %v2177
    %v2179 = vsub.f32 1.0, %v2178
    %v2180 = vmul.f32 %v2177, %v2179
    %v2181 = vadd.f32 %v2177, %v2180
    %vm2182 = vweird.f32 %v1951
    %vm2183 = vweird.f32 %v2177
    %vm2184 = vmor %vm2182, %vm2183
    %v2185 = vsel %vm2184, %v2177, %v2181
    %v2186 = vand.u32 2147483647, %v1951
    %vm2187 = vcmp.eq.f32.partialorder %v2186, 8.507059e+37
    %v2188 = vand.u32 %v1951, 2147483648
    %v2189 = vor.u32 1.1754944e-38, %v2188
    %v2190 = vsel %vm2187, %v2189, %v2185
    %v2191 = vmul.f32 1.0, %v2190
    %2193 = vset.pattern.permute.xlu0 0
    %2194 = vperm.xlu0 %2193, %v1966
    %v2195 = vpop.permute.xlu0 %2194
    %2198 = vset.pattern.permute.xlu0 0
    %2199 = vperm.xlu0 %2198, %v1981
    %v2200 = vpop.permute.xlu0 %2199
    %2203 = vset.pattern.permute.xlu0 0
    %2204 = vperm.xlu0 %2203, %v1996
    %v2205 = vpop.permute.xlu0 %2204
    %2208 = vset.pattern.permute.xlu0 0
    %2209 = vperm.xlu0 %2208, %v2011
    %v2210 = vpop.permute.xlu0 %2209
    %2213 = vset.pattern.permute.xlu0 0
    %2214 = vperm.xlu0 %2213, %v2026
    %v2215 = vpop.permute.xlu0 %2214
    %2218 = vset.pattern.permute.xlu0 0
    %2219 = vperm.xlu0 %2218, %v2041
    %v2220 = vpop.permute.xlu0 %2219
    %2223 = vset.pattern.permute.xlu0 0
    %2224 = vperm.xlu0 %2223, %v2056
    %v2225 = vpop.permute.xlu0 %2224
    %2228 = vset.pattern.permute.xlu0 0
    %2229 = vperm.xlu0 %2228, %v2071
    %v2230 = vpop.permute.xlu0 %2229
    %2233 = vset.pattern.permute.xlu0 0
    %2234 = vperm.xlu0 %2233, %v2086
    %v2235 = vpop.permute.xlu0 %2234
    %2238 = vset.pattern.permute.xlu0 0
    %2239 = vperm.xlu0 %2238, %v2101
    %v2240 = vpop.permute.xlu0 %2239
    %2243 = vset.pattern.permute.xlu0 0
    %2244 = vperm.xlu0 %2243, %v2116
    %v2245 = vpop.permute.xlu0 %2244
    %2248 = vset.pattern.permute.xlu0 0
    %2249 = vperm.xlu0 %2248, %v2131
    %v2250 = vpop.permute.xlu0 %2249
    %2253 = vset.pattern.permute.xlu0 0
    %2254 = vperm.xlu0 %2253, %v2146
    %v2255 = vpop.permute.xlu0 %2254
    %2258 = vset.pattern.permute.xlu0 0
    %2259 = vperm.xlu0 %2258, %v2161
    %v2260 = vpop.permute.xlu0 %2259
    %2263 = vset.pattern.permute.xlu0 0
    %2264 = vperm.xlu0 %2263, %v2176
    %v2265 = vpop.permute.xlu0 %2264
    %2268 = vset.pattern.permute.xlu0 0
    %2269 = vperm.xlu0 %2268, %v2191
    %v2270 = vpop.permute.xlu0 %2269
    %v2272 = vmul.f32 %v1865, %v2195
    %v2273 = vmul.f32 %v1867, %v2200
    %v2274 = vmul.f32 %v1870, %v2205
    %v2275 = vmul.f32 %v1872, %v2210
    %v2276 = vmul.f32 %v1875, %v2215
    %v2277 = vmul.f32 %v1877, %v2220
    %v2278 = vmul.f32 %v1880, %v2225
    %v2279 = vmul.f32 %v1882, %v2230
    %v2280 = vmul.f32 %v1885, %v2235
    %v2281 = vmul.f32 %v1887, %v2240
    %v2282 = vmul.f32 %v1890, %v2245
    %v2283 = vmul.f32 %v1892, %v2250
    %v2284 = vmul.f32 %v1895, %v2255
    %v2285 = vmul.f32 %v1897, %v2260
    %v2286 = vmul.f32 %v1900, %v2265
    %v2287 = vmul.f32 %v1902, %v2270
    %v2288 = vld [vmem:[%s3] sm:$0xff]
    %v2289 = vld [vmem:[%s3 + $0x8] sm:$0xff]
    %v2290 = vld [vmem:[%s3 + $0x10] sm:$0xff]
    %v2291 = vld [vmem:[%s3 + $0x18] sm:$0xff]
    %v2292 = vld [vmem:[%s4] sm:$0x1]
    %v2294 = vperm.slane %v2292, 0
    %vm2296 = vcmask 261120
    %v2298 = vsel %vm2296, %v2272, 0
    %v2301 = vsel %vm2296, %v2273, 0
    %v2304 = vsel %vm2296, %v2274, 0
    %v2307 = vsel %vm2296, %v2275, 0
    %v2310 = vsel %vm2296, %v2276, 0
    %v2313 = vsel %vm2296, %v2277, 0
    %v2316 = vsel %vm2296, %v2278, 0
    %v2319 = vsel %vm2296, %v2279, 0
    %v2322 = vsel %vm2296, %v2280, 0
    %v2325 = vsel %vm2296, %v2281, 0
    %v2328 = vsel %vm2296, %v2282, 0
    %v2331 = vsel %vm2296, %v2283, 0
    %v2334 = vsel %vm2296, %v2284, 0
    %v2337 = vsel %vm2296, %v2285, 0
    %v2340 = vsel %vm2296, %v2286, 0
    %v2343 = vsel %vm2296, %v2287, 0
    %2345 = vmatpush.msra.mxu0 0.0
    %2346 = vmatpush.msra.mxu0 0.0
    %2347 = vmatpush.msra.mxu0 0.0
    %2348 = vmatpush.msra.mxu0 0.0
    %2349 = vmatpush.msra.mxu0 0.0
    %2350 = vmatpush.msra.mxu0 0.0
    %2351 = vmatpush.msra.mxu0 0.0
    %2352 = vmatpush.msra.mxu0 0.0
    %2353 = vmatpush.msra.mxu0 0.0
    %2354 = vmatpush.msra.mxu0 0.0
    %2355 = vmatpush.msra.mxu0 0.0
    %2356 = vmatpush.msra.mxu0 0.0
    %2357 = vmatpush.msra.mxu0 %v2291
    %2358 = vmatpush.msra.mxu0 %v2290
    %2359 = vmatpush.msra.mxu0 %v2289
    %2360 = vmatpush.msra.mxu0 %v2288
    %2361 = vmatmul.f32.gmra.mxu0 %v2298
    %v2362 = vpop.f32.mrf.mxu0
    %v2363 = vadd.f32 %v2294, %v2362
    %2364 = vmatmul.f32.gmra.mxu0 %v2301
    %v2365 = vpop.f32.mrf.mxu0
    %v2366 = vadd.f32 %v2294, %v2365
    %2367 = vmatmul.f32.gmra.mxu0 %v2304
    %v2368 = vpop.f32.mrf.mxu0
    %v2369 = vadd.f32 %v2294, %v2368
    %2370 = vmatmul.f32.gmra.mxu0 %v2307
    %v2371 = vpop.f32.mrf.mxu0
    %v2372 = vadd.f32 %v2294, %v2371
    %2373 = vmatmul.f32.gmra.mxu0 %v2310
    %v2374 = vpop.f32.mrf.mxu0
    %v2375 = vadd.f32 %v2294, %v2374
    %2376 = vmatmul.f32.gmra.mxu0 %v2313
    %v2377 = vpop.f32.mrf.mxu0
    %v2378 = vadd.f32 %v2294, %v2377
    %2379 = vmatmul.f32.gmra.mxu0 %v2316
    %v2380 = vpop.f32.mrf.mxu0
    %v2381 = vadd.f32 %v2294, %v2380
    %2382 = vmatmul.f32.gmra.mxu0 %v2319
    %v2383 = vpop.f32.mrf.mxu0
    %v2384 = vadd.f32 %v2294, %v2383
    %2385 = vmatmul.f32.gmra.mxu0 %v2322
    %v2386 = vpop.f32.mrf.mxu0
    %v2387 = vadd.f32 %v2294, %v2386
    %2388 = vmatmul.f32.gmra.mxu0 %v2325
    %v2389 = vpop.f32.mrf.mxu0
    %v2390 = vadd.f32 %v2294, %v2389
    %2391 = vmatmul.f32.gmra.mxu0 %v2328
    %v2392 = vpop.f32.mrf.mxu0
    %v2393 = vadd.f32 %v2294, %v2392
    %2394 = vmatmul.f32.gmra.mxu0 %v2331
    %v2395 = vpop.f32.mrf.mxu0
    %v2396 = vadd.f32 %v2294, %v2395
    %2397 = vmatmul.f32.gmra.mxu0 %v2334
    %v2398 = vpop.f32.mrf.mxu0
    %v2399 = vadd.f32 %v2294, %v2398
    %2400 = vmatmul.f32.gmra.mxu0 %v2337
    %v2401 = vpop.f32.mrf.mxu0
    %v2402 = vadd.f32 %v2294, %v2401
    %2403 = vmatmul.f32.gmra.mxu0 %v2340
    %v2404 = vpop.f32.mrf.mxu0
    %v2405 = vadd.f32 %v2294, %v2404
    %2406 = vmatmul.f32.gmra.mxu0 %v2343
    %v2407 = vpop.f32.mrf.mxu0
    %v2408 = vadd.f32 %v2294, %v2407
    %2409 = vdwg.mxu0
    %v2410 = vmax.f32 %v2363, 0.0
    %v2411 = vmax.f32 %v2366, 0.0
    %v2412 = vmax.f32 %v2369, 0.0
    %v2413 = vmax.f32 %v2372, 0.0
    %v2414 = vmax.f32 %v2375, 0.0
    %v2415 = vmax.f32 %v2378, 0.0
    %v2416 = vmax.f32 %v2381, 0.0
    %v2417 = vmax.f32 %v2384, 0.0
    %v2418 = vmax.f32 %v2387, 0.0
    %v2419 = vmax.f32 %v2390, 0.0
    %v2420 = vmax.f32 %v2393, 0.0
    %v2421 = vmax.f32 %v2396, 0.0
    %v2422 = vmax.f32 %v2399, 0.0
    %v2423 = vmax.f32 %v2402, 0.0
    %v2424 = vmax.f32 %v2405, 0.0
    %v2425 = vmax.f32 %v2408, 0.0
    %v2426 = vld [vmem:[%s5] sm:$0xff]
    %v2427 = vld [vmem:[%s5 + $0x8] sm:$0xff]
    %v2428 = vld [vmem:[%s5 + $0x10] sm:$0xff]
    %v2429 = vld [vmem:[%s5 + $0x18] sm:$0xff]
    %v2430 = vld [vmem:[%s6] sm:$0x1]
    %v2432 = vperm.slane %v2430, 0
    %v2435 = vsel %vm2296, %v2410, 0
    %v2438 = vsel %vm2296, %v2411, 0
    %v2441 = vsel %vm2296, %v2412, 0
    %v2444 = vsel %vm2296, %v2413, 0
    %v2447 = vsel %vm2296, %v2414, 0
    %v2450 = vsel %vm2296, %v2415, 0
    %v2453 = vsel %vm2296, %v2416, 0
    %v2456 = vsel %vm2296, %v2417, 0
    %v2459 = vsel %vm2296, %v2418, 0
    %v2462 = vsel %vm2296, %v2419, 0
    %v2465 = vsel %vm2296, %v2420, 0
    %v2468 = vsel %vm2296, %v2421, 0
    %v2471 = vsel %vm2296, %v2422, 0
    %v2474 = vsel %vm2296, %v2423, 0
    %v2477 = vsel %vm2296, %v2424, 0
    %v2480 = vsel %vm2296, %v2425, 0
    %2482 = vmatpush.msra.mxu0 0.0
    %2483 = vmatpush.msra.mxu0 0.0
    %2484 = vmatpush.msra.mxu0 0.0
    %2485 = vmatpush.msra.mxu0 0.0
    %2486 = vmatpush.msra.mxu0 0.0
    %2487 = vmatpush.msra.mxu0 0.0
    %2488 = vmatpush.msra.mxu0 0.0
    %2489 = vmatpush.msra.mxu0 0.0
    %2490 = vmatpush.msra.mxu0 0.0
    %2491 = vmatpush.msra.mxu0 0.0
    %2492 = vmatpush.msra.mxu0 0.0
    %2493 = vmatpush.msra.mxu0 0.0
    %2494 = vmatpush.msra.mxu0 %v2429
    %2495 = vmatpush.msra.mxu0 %v2428
    %2496 = vmatpush.msra.mxu0 %v2427
    %2497 = vmatpush.msra.mxu0 %v2426
    %2498 = vmatmul.f32.gmra.mxu0 %v2435
    %v2499 = vpop.f32.mrf.mxu0
    %v2500 = vadd.f32 %v2432, %v2499
    %2501 = vmatmul.f32.gmra.mxu0 %v2438
    %v2502 = vpop.f32.mrf.mxu0
    %v2503 = vadd.f32 %v2432, %v2502
    %2504 = vmatmul.f32.gmra.mxu0 %v2441
    %v2505 = vpop.f32.mrf.mxu0
    %v2506 = vadd.f32 %v2432, %v2505
    %2507 = vmatmul.f32.gmra.mxu0 %v2444
    %v2508 = vpop.f32.mrf.mxu0
    %v2509 = vadd.f32 %v2432, %v2508
    %2510 = vmatmul.f32.gmra.mxu0 %v2447
    %v2511 = vpop.f32.mrf.mxu0
    %v2512 = vadd.f32 %v2432, %v2511
    %2513 = vmatmul.f32.gmra.mxu0 %v2450
    %v2514 = vpop.f32.mrf.mxu0
    %v2515 = vadd.f32 %v2432, %v2514
    %2516 = vmatmul.f32.gmra.mxu0 %v2453
    %v2517 = vpop.f32.mrf.mxu0
    %v2518 = vadd.f32 %v2432, %v2517
    %2519 = vmatmul.f32.gmra.mxu0 %v2456
    %v2520 = vpop.f32.mrf.mxu0
    %v2521 = vadd.f32 %v2432, %v2520
    %2522 = vmatmul.f32.gmra.mxu0 %v2459
    %v2523 = vpop.f32.mrf.mxu0
    %v2524 = vadd.f32 %v2432, %v2523
    %2525 = vmatmul.f32.gmra.mxu0 %v2462
    %v2526 = vpop.f32.mrf.mxu0
    %v2527 = vadd.f32 %v2432, %v2526
    %2528 = vmatmul.f32.gmra.mxu0 %v2465
    %v2529 = vpop.f32.mrf.mxu0
    %v2530 = vadd.f32 %v2432, %v2529
    %2531 = vmatmul.f32.gmra.mxu0 %v2468
    %v2532 = vpop.f32.mrf.mxu0
    %v2533 = vadd.f32 %v2432, %v2532
    %2534 = vmatmul.f32.gmra.mxu0 %v2471
    %v2535 = vpop.f32.mrf.mxu0
    %v2536 = vadd.f32 %v2432, %v2535
    %2537 = vmatmul.f32.gmra.mxu0 %v2474
    %v2538 = vpop.f32.mrf.mxu0
    %v2539 = vadd.f32 %v2432, %v2538
    %2540 = vmatmul.f32.gmra.mxu0 %v2477
    %v2541 = vpop.f32.mrf.mxu0
    %v2542 = vadd.f32 %v2432, %v2541
    %2543 = vmatmul.f32.gmra.mxu0 %v2480
    %v2544 = vpop.f32.mrf.mxu0
    %v2545 = vadd.f32 %v2432, %v2544
    %2546 = vdwg.mxu0
    %2547 = vst [vmem:[#allocation2] sm:$0xff] %v2500
    %2548 = vst [vmem:[#allocation2 + $0x8] sm:$0xff] %v2503
    %2549 = vst [vmem:[#allocation2 + $0x10] sm:$0xff] %v2506
    %2550 = vst [vmem:[#allocation2 + $0x18] sm:$0xff] %v2509
    %2551 = vst [vmem:[#allocation2 + $0x20] sm:$0xff] %v2512
    %2552 = vst [vmem:[#allocation2 + $0x28] sm:$0xff] %v2515
    %2553 = vst [vmem:[#allocation2 + $0x30] sm:$0xff] %v2518
    %2554 = vst [vmem:[#allocation2 + $0x38] sm:$0xff] %v2521
    %2555 = vst [vmem:[#allocation2 + $0x40] sm:$0xff] %v2524
    %2556 = vst [vmem:[#allocation2 + $0x48] sm:$0xff] %v2527
    %2557 = vst [vmem:[#allocation2 + $0x50] sm:$0xff] %v2530
    %2558 = vst [vmem:[#allocation2 + $0x58] sm:$0xff] %v2533
    %2559 = vst [vmem:[#allocation2 + $0x60] sm:$0xff] %v2536
    %2560 = vst [vmem:[#allocation2 + $0x68] sm:$0xff] %v2539
    %2561 = vst [vmem:[#allocation2 + $0x70] sm:$0xff] %v2542
    %2562 = vst [vmem:[#allocation2 + $0x78] sm:$0xff] %v2545
    // Predicated region
    $region30: #{tpu_custom_call.1} parent=1 // pred_check
      _
    $region31: #{tpu_custom_call.1} parent=1 // pred_check_branch
      %2564 = sbr.rel (0) target = $region33
    $region32: #{tpu_custom_call.1} parent=1 // pred_region
      %2566 = vsyncadd [#allocation3], 0
      %s2567 = sshll.u32 [#allocation2], 4
      %s2568 = int_to_ptr.vmem [resolvable:$true] %s2567
      %s2569 = sshll.u32 %s7, 4
      %s2570 = int_to_ptr.hbm [resolvable:$true] %s2569
      %2575 = dma.vmem_to_hbm [thread:$0]  %s2568, 2048, %s2570, [#allocation3], 128, 128, 8
    $region33: #{tpu_custom_call.1} parent=1 // pred_fallthru
      _
    // Predicated region
    $region34: #{tpu_custom_call.1} parent=1 // pred_check
      _
    $region35: #{tpu_custom_call.1} parent=1 // pred_check_branch
      %2577 = sbr.rel (0) target = $region37
    $region36: #{tpu_custom_call.1} parent=1 // pred_region
      %2579 = dma.done [#allocation3], 2048
    $region37: #{tpu_custom_call.1} parent=1 // pred_fallthru
      _
    %2580 = vsyncpa [#allocation3], 1

</llo_original>
